<compile_context>
chip_gen: v7x
topology: tpu7x:2x2x1
jax: 0.10.0
libtpu: 0.0.40
codegen_flags: <defaults>
</compile_context>

<pallas_src>
import functools

import jax
import jax.numpy as jnp
from jax.experimental import pallas as pl
from jax.experimental.pallas import tpu as pltpu

BN_EPS = 1e-5
LANE = 128
NEG_INF = -1e30
W0_BUF_BYTES = 8 * 1024 * 1024          # per-buffer budget for the streamed W0 tile
X_RESIDENT_MAX_BYTES = 4 * 1024 * 1024  # keep x resident below this size


def _round_up(x, m):
    return -(-x // m) * m


def _qy_given_x_kernel(n_clusters, tk, x_resident,
                       x_ref, w0_ref, b0_ref,
                       w1_ref, b1_ref, g1_ref, be1_ref,
                       wl_ref, bl_ref, gl_ref, bel_ref,
                       logp_ref, probs_ref, acc_ref):
    k = pl.program_id(0)

    @pl.when(k == 0)
    def _():
        # Seed the accumulator with the layer-0 bias (no "+ b0" in the epilogue).
        acc_ref[...] = jnp.broadcast_to(b0_ref[...], acc_ref.shape)

    # Partial x @ W0 over the K (gene) tiles: bf16 MXU inputs, f32 accumulate.
    if x_resident:
        start = pl.multiple_of(k * tk, tk)
        x_blk = x_ref[:, pl.ds(start, tk)]
    else:
        x_blk = x_ref[...]
    acc_ref[...] += jnp.dot(x_blk, w0_ref[...],
                            preferred_element_type=jnp.float32)

    @pl.when(k == pl.num_programs(0) - 1)
    def _():
        # encoder Linear 0 output (bias already folded into the accumulator;
        # the reference applies NO activation after this layer)
        h = acc_ref[...]

        # encoder Linear 1 + BatchNorm1d (train-mode batch stats) + ReLU  (f32)
        h = jnp.dot(h, w1_ref[...], preferred_element_type=jnp.float32) + b1_ref[...]
        mean1 = jnp.mean(h, axis=0, keepdims=True)
        c1 = h - mean1                                  # centered: reused for var + norm
        var1 = jnp.mean(c1 * c1, axis=0, keepdims=True)
        h = jnp.maximum(
            c1 * (jax.lax.rsqrt(var1 + BN_EPS) * g1_ref[...]) + be1_ref[...], 0.0)

        # logits head: Linear + BatchNorm1d (class axis padded to 128 lanes)
        logit = jnp.dot(h, wl_ref[...], preferred_element_type=jnp.float32) + bl_ref[...]
        mean_l = jnp.mean(logit, axis=0, keepdims=True)
        cl = logit - mean_l
        var_l = jnp.mean(cl * cl, axis=0, keepdims=True)
        logit = cl * (jax.lax.rsqrt(var_l + BN_EPS) * gl_ref[...]) + bel_ref[...]

        # mask padded class columns before the max / softmax / logsumexp
        col = jax.lax.broadcasted_iota(jnp.int32, logit.shape, 1)
        logit = jnp.where(col < n_clusters, logit, NEG_INF)

        # Categorical(logits=logit): normalized log-probs + probs
        m = jnp.max(logit, axis=-1, keepdims=True)
        e = jnp.exp(logit - m)
        denom = jnp.sum(e, axis=-1, keepdims=True)
        logp_ref[...] = logit - (m + jnp.log(denom))
        probs_ref[...] = e / denom      # exact divide: rows sum to 1 within fp32 rounding


def pack_params(params, *, tk=2048):
    """One-time packing: cast W0 to bf16, pad the K axis to the tile size and the
    class axis to 128 lanes.  Cache the result across forward calls."""
    n_in, h0 = params["w0"].shape
    h1 = params["w1"].shape[1]
    C = params["wl"].shape[1]
    c_pad = _round_up(max(C, LANE), LANE)

    # K tile: large (amortize per-step pipeline overhead) but capped so the
    # double-buffered bf16 W0 slab stays within budget on every generation.
    max_tk = max(LANE, (W0_BUF_BYTES // (h0 * 2)) // LANE * LANE)
    tk_eff = max(LANE, min(_round_up(tk, LANE), _round_up(n_in, LANE), max_tk))
    n_in_pad = _round_up(n_in, tk_eff)

    w0 = params["w0"].astype(jnp.bfloat16)
    if n_in_pad != n_in:
        w0 = jnp.pad(w0, ((0, n_in_pad - n_in), (0, 0)))

    pad_c = ((0, 0), (0, c_pad - C))
    packed = {
        "w0": w0,
        "b0": params["b0"],
        "w1": params["w1"], "b1": params["b1"],
        "g1": params["g1"], "be1": params["be1"],
        "wl": jnp.pad(params["wl"], pad_c),
        "bl": jnp.pad(params["bl"], pad_c),
        "gl": jnp.pad(params["gl"], pad_c, constant_values=1.0),
        "bel": jnp.pad(params["bel"], pad_c),
    }
    meta = {"n_in": n_in, "n_in_pad": n_in_pad, "tk": tk_eff,
            "h0": h0, "h1": h1, "C": C, "c_pad": c_pad}
    return packed, meta


def qy_given_x_forward(x, packed, meta):
    """Forward of qy_given_x_encoder.  `packed, meta = pack_params(params)` should be
    computed once and reused.  Returns {'logits': normalized log-probs, 'probs': probs}."""
    B, n_in = x.shape
    assert n_in == meta["n_in"]
    n_in_pad, tk = meta["n_in_pad"], meta["tk"]
    h0, h1, C, c_pad = meta["h0"], meta["h1"], meta["C"], meta["c_pad"]
    assert h0 % LANE == 0 and h1 % LANE == 0, "hidden widths must be multiples of 128"

    if n_in_pad != n_in:
        x = jnp.pad(x, ((0, 0), (0, n_in_pad - n_in)))
    x = x.astype(jnp.bfloat16)          # halve HBM traffic of the activation input
    num_k = n_in_pad // tk

    # Keep x fully resident when it is tiny (avoids one small strided DMA per step).
    x_resident = (B * n_in_pad * 2) <= X_RESIDENT_MAX_BYTES
    if x_resident:
        x_spec = pl.BlockSpec((B, n_in_pad), lambda k: (0, 0))
        x_bytes = 2 * B * n_in_pad * 2
    else:
        x_spec = pl.BlockSpec((B, tk), lambda k: (0, k))
        x_bytes = 2 * B * tk * 2

    # VMEM budget (double buffers on inputs, f32 accumulator, two f32 outputs).
    vmem_bytes = (x_bytes
                  + 2 * tk * h0 * 2                 # W0 tile (bf16, double buffered)
                  + 2 * h0 * h1 * 4                 # W1 resident (f32)
                  + 2 * h1 * c_pad * 4              # Wl resident (f32)
                  + 2 * 4 * (h0 + 3 * h1 + 3 * c_pad)
                  + B * h0 * 4                      # accumulator scratch
                  + 4 * B * c_pad * 4)              # two outputs
    vmem_limit = int(min(64 * 1024 * 1024, max(16 * 1024 * 1024, 2 * vmem_bytes)))

    grid_spec = pltpu.PrefetchScalarGridSpec(
        num_scalar_prefetch=0,
        grid=(num_k,),
        in_specs=[
            x_spec,                                           # x (resident or K-tiled)
            pl.BlockSpec((tk, h0), lambda k: (k, 0)),         # W0 tile (pipelined)
            pl.BlockSpec((1, h0), lambda k: (0, 0)),          # b0
            pl.BlockSpec((h0, h1), lambda k: (0, 0)),         # W1 (resident)
            pl.BlockSpec((1, h1), lambda k: (0, 0)),          # b1
            pl.BlockSpec((1, h1), lambda k: (0, 0)),          # g1
            pl.BlockSpec((1, h1), lambda k: (0, 0)),          # be1
            pl.BlockSpec((h1, c_pad), lambda k: (0, 0)),      # Wl (resident)
            pl.BlockSpec((1, c_pad), lambda k: (0, 0)),       # bl
            pl.BlockSpec((1, c_pad), lambda k: (0, 0)),       # gl
            pl.BlockSpec((1, c_pad), lambda k: (0, 0)),       # bel
        ],
        out_specs=(pl.BlockSpec((B, c_pad), lambda k: (0, 0)),
                   pl.BlockSpec((B, c_pad), lambda k: (0, 0))),
        scratch_shapes=[pltpu.VMEM((B, h0), jnp.float32)],    # x@W0 accumulator
    )

    logp_pad, probs_pad = pl.pallas_call(
        functools.partial(_qy_given_x_kernel, C, tk, x_resident),
        grid_spec=grid_spec,
        out_shape=(jax.ShapeDtypeStruct((B, c_pad), jnp.float32),
                   jax.ShapeDtypeStruct((B, c_pad), jnp.float32)),
        compiler_params=pltpu.CompilerParams(
            dimension_semantics=("arbitrary",),       # K is a reduction into scratch
            vmem_limit_bytes=vmem_limit),
    )(x, packed["w0"], packed["b0"],
      packed["w1"], packed["b1"], packed["g1"], packed["be1"],
      packed["wl"], packed["bl"], packed["gl"], packed["bel"])

    # slice off the lane padding of the class axis
    return {"logits": logp_pad[:, :C], "probs": probs_pad[:, :C]}


def init_params(key, n_in, n_hidden, n_clusters):
    """Deterministic init mimicking torch.nn.Linear defaults (uniform +/- 1/sqrt(fan_in)).
    Weights stored (in, out); biases / BN params stored (1, out); all f32."""
    h0, h1 = n_hidden
    keys = jax.random.split(key, 6)

    def lin(kw, kb, fan_in, fan_out):
        bound = 1.0 / jnp.sqrt(fan_in)
        w = jax.random.uniform(kw, (fan_in, fan_out), jnp.float32, -bound, bound)
        b = jax.random.uniform(kb, (1, fan_out), jnp.float32, -bound, bound)
        return w, b

    w0, b0 = lin(keys[0], keys[1], n_in, h0)
    w1, b1 = lin(keys[2], keys[3], h0, h1)
    wl, bl = lin(keys[4], keys[5], h1, n_clusters)
    return {
        "w0": w0, "b0": b0,
        "w1": w1, "b1": b1,
        "g1": jnp.ones((1, h1), jnp.float32), "be1": jnp.zeros((1, h1), jnp.float32),
        "wl": wl, "bl": bl,
        "gl": jnp.ones((1, n_clusters), jnp.float32),
        "bel": jnp.zeros((1, n_clusters), jnp.float32),
    }


def _reference_forward(x, p):
    """Pure-JAX reference with matching numerics (bf16 inputs for the big matmul,
    f32 accumulation and f32 everywhere afterwards)."""
    h = jnp.dot(x.astype(jnp.bfloat16), p["w0"].astype(jnp.bfloat16),
                preferred_element_type=jnp.float32) + p["b0"]
    h = jnp.dot(h, p["w1"], preferred_element_type=jnp.float32) + p["b1"]
    m = jnp.mean(h, axis=0, keepdims=True)
    v = jnp.mean((h - m) ** 2, axis=0, keepdims=True)
    h = jnp.maximum((h - m) * jax.lax.rsqrt(v + BN_EPS) * p["g1"] + p["be1"], 0.0)
    logit = jnp.dot(h, p["wl"], preferred_element_type=jnp.float32) + p["bl"]
    m = jnp.mean(logit, axis=0, keepdims=True)
    v = jnp.mean((logit - m) ** 2, axis=0, keepdims=True)
    logit = (logit - m) * jax.lax.rsqrt(v + BN_EPS) * p["gl"] + p["bel"]
    logp = logit - jax.scipy.special.logsumexp(logit, axis=-1, keepdims=True)
    return logp, jnp.exp(logp)


if __name__ == "__main__":
    n_in = 3000            # gene count; not a tile multiple -> exercises K padding
    n_hidden = (256, 256)
    n_clusters = 16        # padded to 128 lanes inside the kernel
    batch = 8

    key = jax.random.PRNGKey(0)
    k_x, k_p = jax.random.split(key)
    x = jax.random.normal(k_x, (batch, n_in), jnp.float32)
    params = init_params(k_p, n_in, n_hidden, n_clusters)

    # Pack/cast weights ONCE (cache across forward calls).
    packed, meta = pack_params(params, tk=2048)

    out = qy_given_x_forward(x, packed, meta)
    jax.block_until_ready(out)

    ref_logp, ref_probs = _reference_forward(x, params)
    assert out["logits"].shape == (batch, n_clusters)
    assert out["probs"].shape == (batch, n_clusters)
    assert jnp.allclose(out["logits"], ref_logp, atol=5e-3, rtol=5e-3)
    assert jnp.allclose(out["probs"], ref_probs, atol=5e-3, rtol=5e-3)
    assert jnp.allclose(jnp.sum(out["probs"], axis=-1), 1.0, atol=1e-3)

    print("KERNEL_OK")
</pallas_src>

<mosaic_0001>
module attributes {stable_mosaic.version = 11 : i64} {
  func.func @_qy_given_x_kernel(%arg0: i32, %arg1: memref<8x4096xbf16, #tpu.memory_space<vmem>>, %arg2: memref<2048x256xbf16, #tpu.memory_space<vmem>>, %arg3: memref<1x256xf32, #tpu.memory_space<vmem>>, %arg4: memref<256x256xf32, #tpu.memory_space<vmem>>, %arg5: memref<1x256xf32, #tpu.memory_space<vmem>>, %arg6: memref<1x256xf32, #tpu.memory_space<vmem>>, %arg7: memref<1x256xf32, #tpu.memory_space<vmem>>, %arg8: memref<256x128xf32, #tpu.memory_space<vmem>>, %arg9: memref<1x128xf32, #tpu.memory_space<vmem>>, %arg10: memref<1x128xf32, #tpu.memory_space<vmem>>, %arg11: memref<1x128xf32, #tpu.memory_space<vmem>>, %arg12: memref<8x128xf32, #tpu.memory_space<vmem>>, %arg13: memref<8x128xf32, #tpu.memory_space<vmem>>, %arg14: memref<8x256xf32, #tpu.memory_space<vmem>>) attributes {dimension_semantics = [#tpu.dimension_semantics<arbitrary>], iteration_bounds = array<i64: 2>, scalar_prefetch = 0 : i64, scratch_operands = 1 : i64, tpu.core_type = #tpu.core_type<tc>, window_params = [{pipeline_mode = #tpu.pipeline_mode<synchronous>, transform_indices = @transform_0, window_bounds = array<i64: 8, 4096>}, {transform_indices = @transform_1, window_bounds = array<i64: 2048, 256>}, {pipeline_mode = #tpu.pipeline_mode<synchronous>, transform_indices = @transform_2, window_bounds = array<i64: 1, 256>}, {pipeline_mode = #tpu.pipeline_mode<synchronous>, transform_indices = @transform_3, window_bounds = array<i64: 256, 256>}, {pipeline_mode = #tpu.pipeline_mode<synchronous>, transform_indices = @transform_4, window_bounds = array<i64: 1, 256>}, {pipeline_mode = #tpu.pipeline_mode<synchronous>, transform_indices = @transform_5, window_bounds = array<i64: 1, 256>}, {pipeline_mode = #tpu.pipeline_mode<synchronous>, transform_indices = @transform_6, window_bounds = array<i64: 1, 256>}, {pipeline_mode = #tpu.pipeline_mode<synchronous>, transform_indices = @transform_7, window_bounds = array<i64: 256, 128>}, {pipeline_mode = #tpu.pipeline_mode<synchronous>, transform_indices = @transform_8, window_bounds = array<i64: 1, 128>}, {pipeline_mode = #tpu.pipeline_mode<synchronous>, transform_indices = @transform_9, window_bounds = array<i64: 1, 128>}, {pipeline_mode = #tpu.pipeline_mode<synchronous>, transform_indices = @transform_10, window_bounds = array<i64: 1, 128>}, {pipeline_mode = #tpu.pipeline_mode<synchronous>, transform_indices = @transform_11, window_bounds = array<i64: 8, 128>}, {pipeline_mode = #tpu.pipeline_mode<synchronous>, transform_indices = @transform_12, window_bounds = array<i64: 8, 128>}]} {
    %c0_i32 = arith.constant 0 : i32
    %0 = arith.cmpi eq, %arg0, %c0_i32 : i32
    %1 = arith.extui %0 : i1 to i32
    %c0_i32_0 = arith.constant 0 : i32
    %2 = arith.cmpi ne, %1, %c0_i32_0 : i32
    scf.if %2 {
      %c0_8 = arith.constant 0 : index
      %c0_9 = arith.constant 0 : index
      %15 = vector.load %arg3[%c0_8, %c0_9] : memref<1x256xf32, #tpu.memory_space<vmem>>, vector<1x256xf32>
      %16 = vector.shape_cast %15 : vector<1x256xf32> to vector<1x256xf32>
      %17 = vector.broadcast %16 : vector<1x256xf32> to vector<8x256xf32>
      %c0_10 = arith.constant 0 : index
      %c0_11 = arith.constant 0 : index
      %18 = vector.load %arg14[%c0_10, %c0_11] : memref<8x256xf32, #tpu.memory_space<vmem>>, vector<8x256xf32>
      tpu.vector_store %arg14[%c0_10, %c0_11], %17 {strides = array<i32>} : memref<8x256xf32, #tpu.memory_space<vmem>>, vector<8x256xf32>,
    } else {
    }
    %c2048_i32 = arith.constant 2048 : i32
    %3 = arith.muli %arg0, %c2048_i32 : i32
    %4 = tpu.assume_multiple %3, 2048 : i32
    %c0 = arith.constant 0 : index
    %5 = arith.index_cast %4 : i32 to index
    %6 = vector.load %arg1[%c0, %5] : memref<8x4096xbf16, #tpu.memory_space<vmem>>, vector<8x2048xbf16>
    %c0_1 = arith.constant 0 : index
    %c0_2 = arith.constant 0 : index
    %7 = vector.load %arg14[%c0_1, %c0_2] : memref<8x256xf32, #tpu.memory_space<vmem>>, vector<8x256xf32>
    %c0_3 = arith.constant 0 : index
    %c0_4 = arith.constant 0 : index
    %8 = vector.load %arg2[%c0_3, %c0_4] : memref<2048x256xbf16, #tpu.memory_space<vmem>>, vector<2048x256xbf16>
    %cst = arith.constant dense<0.000000e+00> : vector<8x256xf32>
    %9 = tpu.matmul %6, %8, %cst {dimension_numbers = #tpu.dot_dimension_numbers<[1], [0], [0], [1], [0, 0, 1, 1], [], []>} : vector<8x2048xbf16>, vector<2048x256xbf16>, vector<8x256xf32> -> vector<8x256xf32>
    %10 = arith.addf %7, %9 : vector<8x256xf32>
    %c0_5 = arith.constant 0 : index
    %c0_6 = arith.constant 0 : index
    %11 = vector.load %arg14[%c0_5, %c0_6] : memref<8x256xf32, #tpu.memory_space<vmem>>, vector<8x256xf32>
    tpu.vector_store %arg14[%c0_5, %c0_6], %10 {strides = array<i32>} : memref<8x256xf32, #tpu.memory_space<vmem>>, vector<8x256xf32>,
    %c1_i32 = arith.constant 1 : i32
    %12 = arith.cmpi eq, %arg0, %c1_i32 : i32
    %13 = arith.extui %12 : i1 to i32
    %c0_i32_7 = arith.constant 0 : i32
    %14 = arith.cmpi ne, %13, %c0_i32_7 : i32
    scf.if %14 {
      %c0_8 = arith.constant 0 : index
      %c0_9 = arith.constant 0 : index
      %15 = vector.load %arg14[%c0_8, %c0_9] : memref<8x256xf32, #tpu.memory_space<vmem>>, vector<8x256xf32>
      %c0_10 = arith.constant 0 : index
      %c0_11 = arith.constant 0 : index
      %16 = vector.load %arg4[%c0_10, %c0_11] : memref<256x256xf32, #tpu.memory_space<vmem>>, vector<256x256xf32>
      %cst_12 = arith.constant dense<0.000000e+00> : vector<8x256xf32>
      %17 = tpu.matmul %15, %16, %cst_12 {dimension_numbers = #tpu.dot_dimension_numbers<[1], [0], [0], [1], [0, 0, 1, 1], [], []>} : vector<8x256xf32>, vector<256x256xf32>, vector<8x256xf32> -> vector<8x256xf32>
      %c0_13 = arith.constant 0 : index
      %c0_14 = arith.constant 0 : index
      %18 = vector.load %arg5[%c0_13, %c0_14] : memref<1x256xf32, #tpu.memory_space<vmem>>, vector<1x256xf32>
      %19 = vector.broadcast %18 : vector<1x256xf32> to vector<8x256xf32>
      %20 = arith.addf %17, %19 : vector<8x256xf32>
      %cst_15 = arith.constant dense<0.000000e+00> : vector<256xf32>
      %21 = vector.multi_reduction <add>, %20, %cst_15 [0] : vector<8x256xf32> to vector<256xf32>
      %22 = vector.shape_cast %21 : vector<256xf32> to vector<1x256xf32>
      %cst_16 = arith.constant 8.000000e+00 : f32
      %23 = vector.broadcast %cst_16 : f32 to vector<1x256xf32>
      %24 = arith.divf %22, %23 : vector<1x256xf32>
      %25 = vector.broadcast %24 : vector<1x256xf32> to vector<8x256xf32>
      %26 = arith.subf %20, %25 : vector<8x256xf32>
      %27 = arith.mulf %26, %26 : vector<8x256xf32>
      %cst_17 = arith.constant dense<0.000000e+00> : vector<256xf32>
      %28 = vector.multi_reduction <add>, %27, %cst_17 [0] : vector<8x256xf32> to vector<256xf32>
      %29 = vector.shape_cast %28 : vector<256xf32> to vector<1x256xf32>
      %cst_18 = arith.constant 8.000000e+00 : f32
      %30 = vector.broadcast %cst_18 : f32 to vector<1x256xf32>
      %31 = arith.divf %29, %30 : vector<1x256xf32>
      %cst_19 = arith.constant 9.99999974E-6 : f32
      %32 = vector.broadcast %cst_19 : f32 to vector<1x256xf32>
      %33 = arith.addf %31, %32 : vector<1x256xf32>
      %34 = math.rsqrt %33 : vector<1x256xf32>
      %c0_20 = arith.constant 0 : index
      %c0_21 = arith.constant 0 : index
      %35 = vector.load %arg6[%c0_20, %c0_21] : memref<1x256xf32, #tpu.memory_space<vmem>>, vector<1x256xf32>
      %36 = arith.mulf %34, %35 : vector<1x256xf32>
      %37 = vector.broadcast %36 : vector<1x256xf32> to vector<8x256xf32>
      %38 = arith.mulf %26, %37 : vector<8x256xf32>
      %c0_22 = arith.constant 0 : index
      %c0_23 = arith.constant 0 : index
      %39 = vector.load %arg7[%c0_22, %c0_23] : memref<1x256xf32, #tpu.memory_space<vmem>>, vector<1x256xf32>
      %40 = vector.broadcast %39 : vector<1x256xf32> to vector<8x256xf32>
      %41 = arith.addf %38, %40 : vector<8x256xf32>
      %cst_24 = arith.constant 0.000000e+00 : f32
      %42 = vector.broadcast %cst_24 : f32 to vector<8x256xf32>
      %43 = arith.maximumf %41, %42 : vector<8x256xf32>
      %c0_25 = arith.constant 0 : index
      %c0_26 = arith.constant 0 : index
      %44 = vector.load %arg8[%c0_25, %c0_26] : memref<256x128xf32, #tpu.memory_space<vmem>>, vector<256x128xf32>
      %cst_27 = arith.constant dense<0.000000e+00> : vector<8x128xf32>
      %45 = tpu.matmul %43, %44, %cst_27 {dimension_numbers = #tpu.dot_dimension_numbers<[1], [0], [0], [1], [0, 0, 1, 1], [], []>} : vector<8x256xf32>, vector<256x128xf32>, vector<8x128xf32> -> vector<8x128xf32>
      %c0_28 = arith.constant 0 : index
      %c0_29 = arith.constant 0 : index
      %46 = vector.load %arg9[%c0_28, %c0_29] : memref<1x128xf32, #tpu.memory_space<vmem>>, vector<1x128xf32>
      %47 = vector.broadcast %46 : vector<1x128xf32> to vector<8x128xf32>
      %48 = arith.addf %45, %47 : vector<8x128xf32>
      %cst_30 = arith.constant dense<0.000000e+00> : vector<128xf32>
      %49 = vector.multi_reduction <add>, %48, %cst_30 [0] : vector<8x128xf32> to vector<128xf32>
      %50 = vector.shape_cast %49 : vector<128xf32> to vector<1x128xf32>
      %cst_31 = arith.constant 8.000000e+00 : f32
      %51 = vector.broadcast %cst_31 : f32 to vector<1x128xf32>
      %52 = arith.divf %50, %51 : vector<1x128xf32>
      %53 = vector.broadcast %52 : vector<1x128xf32> to vector<8x128xf32>
      %54 = arith.subf %48, %53 : vector<8x128xf32>
      %55 = arith.mulf %54, %54 : vector<8x128xf32>
      %cst_32 = arith.constant dense<0.000000e+00> : vector<128xf32>
      %56 = vector.multi_reduction <add>, %55, %cst_32 [0] : vector<8x128xf32> to vector<128xf32>
      %57 = vector.shape_cast %56 : vector<128xf32> to vector<1x128xf32>
      %cst_33 = arith.constant 8.000000e+00 : f32
      %58 = vector.broadcast %cst_33 : f32 to vector<1x128xf32>
      %59 = arith.divf %57, %58 : vector<1x128xf32>
      %cst_34 = arith.constant 9.99999974E-6 : f32
      %60 = vector.broadcast %cst_34 : f32 to vector<1x128xf32>
      %61 = arith.addf %59, %60 : vector<1x128xf32>
      %62 = math.rsqrt %61 : vector<1x128xf32>
      %c0_35 = arith.constant 0 : index
      %c0_36 = arith.constant 0 : index
      %63 = vector.load %arg10[%c0_35, %c0_36] : memref<1x128xf32, #tpu.memory_space<vmem>>, vector<1x128xf32>
      %64 = arith.mulf %62, %63 : vector<1x128xf32>
      %65 = vector.broadcast %64 : vector<1x128xf32> to vector<8x128xf32>
      %66 = arith.mulf %54, %65 : vector<8x128xf32>
      %c0_37 = arith.constant 0 : index
      %c0_38 = arith.constant 0 : index
      %67 = vector.load %arg11[%c0_37, %c0_38] : memref<1x128xf32, #tpu.memory_space<vmem>>, vector<1x128xf32>
      %68 = vector.broadcast %67 : vector<1x128xf32> to vector<8x128xf32>
      %69 = arith.addf %66, %68 : vector<8x128xf32>
      %70 = tpu.iota {dimensions = array<i32: 1>} : vector<8x128xi32>
      %c16_i32 = arith.constant 16 : i32
      %71 = vector.broadcast %c16_i32 : i32 to vector<8x128xi32>
      %72 = arith.cmpi slt, %70, %71 : vector<8x128xi32>
      %cst_39 = arith.constant -1.000000e+30 : f32
      %73 = vector.broadcast %cst_39 : f32 to vector<8x128xf32>
      %74 = arith.select %72, %69, %73 : vector<8x128xi1>, vector<8x128xf32>
      %cst_40 = arith.constant dense<0xFF800000> : vector<8xf32>
      %75 = vector.multi_reduction <maximumf>, %74, %cst_40 [1] : vector<8x128xf32> to vector<8xf32>
      %76 = vector.shape_cast %75 : vector<8xf32> to vector<8x1xf32>
      %77 = vector.broadcast %76 : vector<8x1xf32> to vector<8x128xf32>
      %78 = arith.subf %74, %77 : vector<8x128xf32>
      %79 = math.exp %78 : vector<8x128xf32>
      %cst_41 = arith.constant dense<0.000000e+00> : vector<8xf32>
      %80 = vector.multi_reduction <add>, %79, %cst_41 [1] : vector<8x128xf32> to vector<8xf32>
      %81 = vector.shape_cast %80 : vector<8xf32> to vector<8x1xf32>
      %82 = math.log %81 : vector<8x1xf32>
      %83 = arith.addf %76, %82 : vector<8x1xf32>
      %84 = vector.broadcast %83 : vector<8x1xf32> to vector<8x128xf32>
      %85 = arith.subf %74, %84 : vector<8x128xf32>
      %c0_42 = arith.constant 0 : index
      %c0_43 = arith.constant 0 : index
      %86 = vector.load %arg12[%c0_42, %c0_43] : memref<8x128xf32, #tpu.memory_space<vmem>>, vector<8x128xf32>
      tpu.vector_store %arg12[%c0_42, %c0_43], %85 {strides = array<i32>} : memref<8x128xf32, #tpu.memory_space<vmem>>, vector<8x128xf32>,
      %87 = vector.broadcast %81 : vector<8x1xf32> to vector<8x128xf32>
      %88 = arith.divf %79, %87 : vector<8x128xf32>
      %c0_44 = arith.constant 0 : index
      %c0_45 = arith.constant 0 : index
      %89 = vector.load %arg13[%c0_44, %c0_45] : memref<8x128xf32, #tpu.memory_space<vmem>>, vector<8x128xf32>
      tpu.vector_store %arg13[%c0_44, %c0_45], %88 {strides = array<i32>} : memref<8x128xf32, #tpu.memory_space<vmem>>, vector<8x128xf32>,
    } else {
    }
    return
  }
  func.func @transform_0(%arg0: i32) -> (i32, i32) {
    %c0_i32 = arith.constant 0 : i32
    %c0_i32_0 = arith.constant 0 : i32
    %c0_i32_1 = arith.constant 0 : i32
    return %c0_i32, %c0_i32_0 : i32, i32
  }
  func.func @transform_1(%arg0: i32) -> (i32, i32) {
    %c0_i32 = arith.constant 0 : i32
    %c0_i32_0 = arith.constant 0 : i32
    return %arg0, %c0_i32 : i32, i32
  }
  func.func @transform_2(%arg0: i32) -> (i32, i32) {
    %c0_i32 = arith.constant 0 : i32
    %c0_i32_0 = arith.constant 0 : i32
    %c0_i32_1 = arith.constant 0 : i32
    return %c0_i32, %c0_i32_0 : i32, i32
  }
  func.func @transform_3(%arg0: i32) -> (i32, i32) {
    %c0_i32 = arith.constant 0 : i32
    %c0_i32_0 = arith.constant 0 : i32
    %c0_i32_1 = arith.constant 0 : i32
    return %c0_i32, %c0_i32_0 : i32, i32
  }
  func.func @transform_4(%arg0: i32) -> (i32, i32) {
    %c0_i32 = arith.constant 0 : i32
    %c0_i32_0 = arith.constant 0 : i32
    %c0_i32_1 = arith.constant 0 : i32
    return %c0_i32, %c0_i32_0 : i32, i32
  }
  func.func @transform_5(%arg0: i32) -> (i32, i32) {
    %c0_i32 = arith.constant 0 : i32
    %c0_i32_0 = arith.constant 0 : i32
    %c0_i32_1 = arith.constant 0 : i32
    return %c0_i32, %c0_i32_0 : i32, i32
  }
  func.func @transform_6(%arg0: i32) -> (i32, i32) {
    %c0_i32 = arith.constant 0 : i32
    %c0_i32_0 = arith.constant 0 : i32
    %c0_i32_1 = arith.constant 0 : i32
    return %c0_i32, %c0_i32_0 : i32, i32
  }
  func.func @transform_7(%arg0: i32) -> (i32, i32) {
    %c0_i32 = arith.constant 0 : i32
    %c0_i32_0 = arith.constant 0 : i32
    %c0_i32_1 = arith.constant 0 : i32
    return %c0_i32, %c0_i32_0 : i32, i32
  }
  func.func @transform_8(%arg0: i32) -> (i32, i32) {
    %c0_i32 = arith.constant 0 : i32
    %c0_i32_0 = arith.constant 0 : i32
    %c0_i32_1 = arith.constant 0 : i32
    return %c0_i32, %c0_i32_0 : i32, i32
  }
  func.func @transform_9(%arg0: i32) -> (i32, i32) {
    %c0_i32 = arith.constant 0 : i32
    %c0_i32_0 = arith.constant 0 : i32
    %c0_i32_1 = arith.constant 0 : i32
    return %c0_i32, %c0_i32_0 : i32, i32
  }
  func.func @transform_10(%arg0: i32) -> (i32, i32) {
    %c0_i32 = arith.constant 0 : i32
    %c0_i32_0 = arith.constant 0 : i32
    %c0_i32_1 = arith.constant 0 : i32
    return %c0_i32, %c0_i32_0 : i32, i32
  }
  func.func @transform_11(%arg0: i32) -> (i32, i32) {
    %c0_i32 = arith.constant 0 : i32
    %c0_i32_0 = arith.constant 0 : i32
    %c0_i32_1 = arith.constant 0 : i32
    return %c0_i32, %c0_i32_0 : i32, i32
  }
  func.func @transform_12(%arg0: i32) -> (i32, i32) {
    %c0_i32 = arith.constant 0 : i32
    %c0_i32_0 = arith.constant 0 : i32
    %c0_i32_1 = arith.constant 0 : i32
    return %c0_i32, %c0_i32_0 : i32, i32
  }
}

</mosaic_0001>

<llo_original>
// kernel: tpu_custom_call.1
$region0: #{tpu_custom_call.1}
  #allocation0 [shape = 'u32[]', space=smem, size = 0x4, offset = 0x4, fixed_abs, tag = 'smem constant byte address 0x4 - core index']
  #allocation1 [shape = 'u32[144,128]{1,0:T(1,128)}', space=vmem, size = 0x12000, scoped, tag = 'internal scratch']
  #allocation2 [shape = 'f32[8,256]{1,0:T(8,128)}', space=vmem, size = 0x2000, scoped, tag = 'scratch operand']
  %s0 = inlined_call_operand.hbm [shape: bf16[8,4096], index: 0, kind: input, shape index: {}]
  %s1 = inlined_call_operand.hbm [shape: bf16[4096,256], index: 1, kind: input, shape index: {}]
  %s2 = inlined_call_operand.hbm [shape: f32[1,256], index: 2, kind: input, shape index: {}]
  %s3 = inlined_call_operand.hbm [shape: f32[256,256], index: 3, kind: input, shape index: {}]
  %s4 = inlined_call_operand.hbm [shape: f32[1,256], index: 4, kind: input, shape index: {}]
  %s5 = inlined_call_operand.hbm [shape: f32[1,256], index: 5, kind: input, shape index: {}]
  %s6 = inlined_call_operand.hbm [shape: f32[1,256], index: 6, kind: input, shape index: {}]
  %s7 = inlined_call_operand.hbm [shape: f32[256,128], index: 7, kind: input, shape index: {}]
  %s8 = inlined_call_operand.hbm [shape: f32[1,128], index: 8, kind: input, shape index: {}]
  %s9 = inlined_call_operand.hbm [shape: f32[1,128], index: 9, kind: input, shape index: {}]
  %s10 = inlined_call_operand.hbm [shape: f32[1,128], index: 10, kind: input, shape index: {}]
  %s11 = inlined_call_operand.hbm [shape: f32[8,128], index: 11, kind: output, shape index: {0}]
  %s12 = inlined_call_operand.hbm [shape: f32[8,128], index: 12, kind: output, shape index: {1}]
  %13 = xla_tuple %s11, %s12
  %s14 = sld [smem:[#allocation0]]
  $region137: #{tpu_custom_call.1} parent=0
    _
  %s16 = ssub.s32 1, %s14
  %s17 = scalar_select 0, %s16, %s14
  $region1: #{tpu_custom_call.1} parent=0
    #allocation3 [shape = 'u8[65536]{0}', space=vmem, size = 0x10000, scoped, tag = 'input window, operand 0, single buffered']
    #allocation4 [shape = 's32[2]{0}', space=sflag, size = 0x8, scoped, tag = 'scoped memory for tpu_custom_call.1']
    #allocation5 [shape = 's32[2]{0}', space=sflag, size = 0x8, scoped, tag = 'scoped memory for tpu_custom_call.1']
    #allocation6 [shape = 'u8[2097152]{0}', space=vmem, size = 0x200000, scoped, tag = 'input window, operand 1']
    #allocation7 [shape = 's32[2]{0}', space=sflag, size = 0x8, scoped, tag = 'scoped memory for tpu_custom_call.1']
    #allocation8 [shape = 'u8[1024]{0}', space=vmem, size = 0x400, scoped, tag = 'input window, operand 2, single buffered']
    #allocation9 [shape = 'u8[262144]{0}', space=vmem, size = 0x40000, scoped, tag = 'input window, operand 3, single buffered']
    #allocation10 [shape = 's32[1]{0}', space=sflag, size = 0x4, scoped, tag = 'scoped memory for tpu_custom_call.1']
    #allocation11 [shape = 'u8[1024]{0}', space=vmem, size = 0x400, scoped, tag = 'input window, operand 4, single buffered']
    #allocation12 [shape = 'u8[1024]{0}', space=vmem, size = 0x400, scoped, tag = 'input window, operand 5, single buffered']
    #allocation13 [shape = 's32[1]{0}', space=sflag, size = 0x4, scoped, tag = 'scoped memory for tpu_custom_call.1']
    #allocation14 [shape = 'u8[1024]{0}', space=vmem, size = 0x400, scoped, tag = 'input window, operand 6, single buffered']
    #allocation15 [shape = 'u8[131072]{0}', space=vmem, size = 0x20000, scoped, tag = 'input window, operand 7, single buffered']
    #allocation16 [shape = 's32[1]{0}', space=sflag, size = 0x4, scoped, tag = 'scoped memory for tpu_custom_call.1']
    #allocation17 [shape = 'u8[512]{0}', space=vmem, size = 0x400, scoped, tag = 'input window, operand 8, single buffered']
    #allocation18 [shape = 'u8[512]{0}', space=vmem, size = 0x400, scoped, tag = 'input window, operand 9, single buffered']
    #allocation19 [shape = 's32[1]{0}', space=sflag, size = 0x4, scoped, tag = 'scoped memory for tpu_custom_call.1']
    #allocation20 [shape = 'u8[512]{0}', space=vmem, size = 0x400, scoped, tag = 'input window, operand 10, single buffered']
    #allocation21 [shape = 'u8[4096]{0}', space=vmem, size = 0x1000, scoped, tag = 'output window, operand 0, single buffered']
    #allocation22 [shape = 'u8[4096]{0}', space=vmem, size = 0x1000, scoped, tag = 'output window, operand 1, single buffered']
    #allocation23 [shape = 's32[1]{0}', space=sflag, size = 0x4, scoped, tag = 'scoped memory for tpu_custom_call.1']
    %18 = vsyncpa [#allocation4], 0
    %19 = vsyncpa [#allocation7], 0
    %s20 = scalar_lea.sflag [#allocation7], 1
    %21 = vsyncpa %s20, 0
    %22 = vsyncpa [#allocation10], 0
    %23 = vsyncpa [#allocation13], 0
    %24 = vsyncpa [#allocation16], 0
    %25 = vsyncpa [#allocation19], 0
    %26 = vsyncpa [#allocation5], 0
    %27 = vsyncpa [#allocation23], 0
    loop: start=0, step=1, limit=4
    $region2: #{tpu_custom_call.1} parent=1 // loop_pre_header
      _
    $region3: #{tpu_custom_call.1} parent=1 // loop_header
      %s29 = sphi 0, %s33
      %p30 = scmp.ge.s32.totalorder %s29, 4
      %s37 = sphi 0, %s37
      %s39 = sphi 0, %s37
      %s40 = sphi 0, %s39
      %s54 = sphi 0, %s40
      %s60 = sphi 0, %s62
      %s63 = sphi 0, %s60
      %s64 = sphi 0, %s63
      %s80 = sphi 0, %s64
      %s84 = sphi 0, %s84
      %s86 = sphi 0, %s84
      %s87 = sphi 0, %s86
      %s101 = sphi 0, %s87
      %s105 = sphi 0, %s105
      %s107 = sphi 0, %s105
      %s108 = sphi 0, %s107
      %s122 = sphi 0, %s108
      %s126 = sphi 0, %s126
      %s128 = sphi 0, %s126
      %s129 = sphi 0, %s128
      %s143 = sphi 0, %s129
      %s147 = sphi 0, %s147
      %s149 = sphi 0, %s147
      %s150 = sphi 0, %s149
      %s164 = sphi 0, %s150
      %s168 = sphi 0, %s168
      %s170 = sphi 0, %s168
      %s171 = sphi 0, %s170
      %s185 = sphi 0, %s171
      %s189 = sphi 0, %s189
      %s191 = sphi 0, %s189
      %s192 = sphi 0, %s191
      %s206 = sphi 0, %s192
      %s210 = sphi 0, %s210
      %s212 = sphi 0, %s210
      %s213 = sphi 0, %s212
      %s227 = sphi 0, %s213
      %s231 = sphi 0, %s231
      %s233 = sphi 0, %s231
      %s234 = sphi 0, %s233
      %s248 = sphi 0, %s234
      %s252 = sphi 0, %s252
      %s254 = sphi 0, %s252
      %s255 = sphi 0, %s254
      %s269 = sphi 0, %s255
      %s273 = sphi 0, %s273
      %s275 = sphi 0, %s273
      %s276 = sphi 0, %s275
      %s290 = sphi 0, %s276
      %s294 = sphi 0, %s294
      %s296 = sphi 0, %s294
      %s297 = sphi 0, %s296
      %s311 = sphi 0, %s297
    $region4: #{tpu_custom_call.1} parent=1 // loop_header_branch
      %32 = sbr.rel (%p30) target = $region8
    $region5: #{tpu_custom_call.1} parent=1 // loop_body
      %s34 = ssub.s32 %s29, 1
      %s35 = ssub.s32 %s29, 2
      %s36 = sadd.s32 %s29, 1
      %s38 = sadd.s32 %s37, 1
      %p41 = scmp.eq.s32.totalorder %s29, 1
      %p42 = scmp.ne.s32.totalorder %s37, %s39
      %p43 = scmp.eq.s32.totalorder %s29, 0
      %p44 = por %p42, %p43
      %p45 = scmp.ne.s32.totalorder %s37, %s39
      %p46 = scmp.eq.s32.totalorder %s34, 1
      %p47 = por %p45, %p46
      %p48 = scmp.ne.s32.totalorder %s39, %s40
      %p49 = scmp.eq.s32.totalorder %s34, 0
      %p50 = por %p48, %p49
      %p51 = scmp.ne.s32.totalorder %s39, %s40
      %p52 = scmp.eq.s32.totalorder %s35, 1
      %p53 = por %p51, %p52
      %p55 = scmp.ne.s32.totalorder %s40, %s54
      %p56 = scmp.eq.s32.totalorder %s35, 0
      %p57 = por %p55, %p56
      %s58 = ssub.s32 %s29, %s36
      %p59 = scmp.eq.s32.totalorder %s58, 0
      %s61 = sadd.s32 %s60, 1
      %s62 = scalar_select %p59, %s60, %s61
      %p65 = pneg %p59
      %p66 = scmp.eq.s32.totalorder %s29, 1
      %p67 = por %p65, %p66
      %p68 = scmp.ne.s32.totalorder %s60, %s63
      %p69 = scmp.eq.s32.totalorder %s29, 0
      %p70 = por %p68, %p69
      %p71 = scmp.ne.s32.totalorder %s60, %s63
      %p72 = scmp.eq.s32.totalorder %s34, 1
      %p73 = por %p71, %p72
      %p74 = scmp.ne.s32.totalorder %s63, %s64
      %p75 = scmp.eq.s32.totalorder %s34, 0
      %p76 = por %p74, %p75
      %p77 = scmp.ne.s32.totalorder %s63, %s64
      %p78 = scmp.eq.s32.totalorder %s35, 1
      %p79 = por %p77, %p78
      %p81 = scmp.ne.s32.totalorder %s64, %s80
      %p82 = scmp.eq.s32.totalorder %s35, 0
      %p83 = por %p81, %p82
      %s85 = sadd.s32 %s84, 1
      %p88 = scmp.eq.s32.totalorder %s29, 1
      %p89 = scmp.ne.s32.totalorder %s84, %s86
      %p90 = scmp.eq.s32.totalorder %s29, 0
      %p91 = por %p89, %p90
      %p92 = scmp.ne.s32.totalorder %s84, %s86
      %p93 = scmp.eq.s32.totalorder %s34, 1
      %p94 = por %p92, %p93
      %p95 = scmp.ne.s32.totalorder %s86, %s87
      %p96 = scmp.eq.s32.totalorder %s34, 0
      %p97 = por %p95, %p96
      %p98 = scmp.ne.s32.totalorder %s86, %s87
      %p99 = scmp.eq.s32.totalorder %s35, 1
      %p100 = por %p98, %p99
      %p102 = scmp.ne.s32.totalorder %s87, %s101
      %p103 = scmp.eq.s32.totalorder %s35, 0
      %p104 = por %p102, %p103
      %s106 = sadd.s32 %s105, 1
      %p109 = scmp.eq.s32.totalorder %s29, 1
      %p110 = scmp.ne.s32.totalorder %s105, %s107
      %p111 = scmp.eq.s32.totalorder %s29, 0
      %p112 = por %p110, %p111
      %p113 = scmp.ne.s32.totalorder %s105, %s107
      %p114 = scmp.eq.s32.totalorder %s34, 1
      %p115 = por %p113, %p114
      %p116 = scmp.ne.s32.totalorder %s107, %s108
      %p117 = scmp.eq.s32.totalorder %s34, 0
      %p118 = por %p116, %p117
      %p119 = scmp.ne.s32.totalorder %s107, %s108
      %p120 = scmp.eq.s32.totalorder %s35, 1
      %p121 = por %p119, %p120
      %p123 = scmp.ne.s32.totalorder %s108, %s122
      %p124 = scmp.eq.s32.totalorder %s35, 0
      %p125 = por %p123, %p124
      %s127 = sadd.s32 %s126, 1
      %p130 = scmp.eq.s32.totalorder %s29, 1
      %p131 = scmp.ne.s32.totalorder %s126, %s128
      %p132 = scmp.eq.s32.totalorder %s29, 0
      %p133 = por %p131, %p132
      %p134 = scmp.ne.s32.totalorder %s126, %s128
      %p135 = scmp.eq.s32.totalorder %s34, 1
      %p136 = por %p134, %p135
      %p137 = scmp.ne.s32.totalorder %s128, %s129
      %p138 = scmp.eq.s32.totalorder %s34, 0
      %p139 = por %p137, %p138
      %p140 = scmp.ne.s32.totalorder %s128, %s129
      %p141 = scmp.eq.s32.totalorder %s35, 1
      %p142 = por %p140, %p141
      %p144 = scmp.ne.s32.totalorder %s129, %s143
      %p145 = scmp.eq.s32.totalorder %s35, 0
      %p146 = por %p144, %p145
      %s148 = sadd.s32 %s147, 1
      %p151 = scmp.eq.s32.totalorder %s29, 1
      %p152 = scmp.ne.s32.totalorder %s147, %s149
      %p153 = scmp.eq.s32.totalorder %s29, 0
      %p154 = por %p152, %p153
      %p155 = scmp.ne.s32.totalorder %s147, %s149
      %p156 = scmp.eq.s32.totalorder %s34, 1
      %p157 = por %p155, %p156
      %p158 = scmp.ne.s32.totalorder %s149, %s150
      %p159 = scmp.eq.s32.totalorder %s34, 0
      %p160 = por %p158, %p159
      %p161 = scmp.ne.s32.totalorder %s149, %s150
      %p162 = scmp.eq.s32.totalorder %s35, 1
      %p163 = por %p161, %p162
      %p165 = scmp.ne.s32.totalorder %s150, %s164
      %p166 = scmp.eq.s32.totalorder %s35, 0
      %p167 = por %p165, %p166
      %s169 = sadd.s32 %s168, 1
      %p172 = scmp.eq.s32.totalorder %s29, 1
      %p173 = scmp.ne.s32.totalorder %s168, %s170
      %p174 = scmp.eq.s32.totalorder %s29, 0
      %p175 = por %p173, %p174
      %p176 = scmp.ne.s32.totalorder %s168, %s170
      %p177 = scmp.eq.s32.totalorder %s34, 1
      %p178 = por %p176, %p177
      %p179 = scmp.ne.s32.totalorder %s170, %s171
      %p180 = scmp.eq.s32.totalorder %s34, 0
      %p181 = por %p179, %p180
      %p182 = scmp.ne.s32.totalorder %s170, %s171
      %p183 = scmp.eq.s32.totalorder %s35, 1
      %p184 = por %p182, %p183
      %p186 = scmp.ne.s32.totalorder %s171, %s185
      %p187 = scmp.eq.s32.totalorder %s35, 0
      %p188 = por %p186, %p187
      %s190 = sadd.s32 %s189, 1
      %p193 = scmp.eq.s32.totalorder %s29, 1
      %p194 = scmp.ne.s32.totalorder %s189, %s191
      %p195 = scmp.eq.s32.totalorder %s29, 0
      %p196 = por %p194, %p195
      %p197 = scmp.ne.s32.totalorder %s189, %s191
      %p198 = scmp.eq.s32.totalorder %s34, 1
      %p199 = por %p197, %p198
      %p200 = scmp.ne.s32.totalorder %s191, %s192
      %p201 = scmp.eq.s32.totalorder %s34, 0
      %p202 = por %p200, %p201
      %p203 = scmp.ne.s32.totalorder %s191, %s192
      %p204 = scmp.eq.s32.totalorder %s35, 1
      %p205 = por %p203, %p204
      %p207 = scmp.ne.s32.totalorder %s192, %s206
      %p208 = scmp.eq.s32.totalorder %s35, 0
      %p209 = por %p207, %p208
      %s211 = sadd.s32 %s210, 1
      %p214 = scmp.eq.s32.totalorder %s29, 1
      %p215 = scmp.ne.s32.totalorder %s210, %s212
      %p216 = scmp.eq.s32.totalorder %s29, 0
      %p217 = por %p215, %p216
      %p218 = scmp.ne.s32.totalorder %s210, %s212
      %p219 = scmp.eq.s32.totalorder %s34, 1
      %p220 = por %p218, %p219
      %p221 = scmp.ne.s32.totalorder %s212, %s213
      %p222 = scmp.eq.s32.totalorder %s34, 0
      %p223 = por %p221, %p222
      %p224 = scmp.ne.s32.totalorder %s212, %s213
      %p225 = scmp.eq.s32.totalorder %s35, 1
      %p226 = por %p224, %p225
      %p228 = scmp.ne.s32.totalorder %s213, %s227
      %p229 = scmp.eq.s32.totalorder %s35, 0
      %p230 = por %p228, %p229
      %s232 = sadd.s32 %s231, 1
      %p235 = scmp.eq.s32.totalorder %s29, 1
      %p236 = scmp.ne.s32.totalorder %s231, %s233
      %p237 = scmp.eq.s32.totalorder %s29, 0
      %p238 = por %p236, %p237
      %p239 = scmp.ne.s32.totalorder %s231, %s233
      %p240 = scmp.eq.s32.totalorder %s34, 1
      %p241 = por %p239, %p240
      %p242 = scmp.ne.s32.totalorder %s233, %s234
      %p243 = scmp.eq.s32.totalorder %s34, 0
      %p244 = por %p242, %p243
      %p245 = scmp.ne.s32.totalorder %s233, %s234
      %p246 = scmp.eq.s32.totalorder %s35, 1
      %p247 = por %p245, %p246
      %p249 = scmp.ne.s32.totalorder %s234, %s248
      %p250 = scmp.eq.s32.totalorder %s35, 0
      %p251 = por %p249, %p250
      %s253 = sadd.s32 %s252, 1
      %p256 = scmp.eq.s32.totalorder %s29, 1
      %p257 = scmp.ne.s32.totalorder %s252, %s254
      %p258 = scmp.eq.s32.totalorder %s29, 0
      %p259 = por %p257, %p258
      %p260 = scmp.ne.s32.totalorder %s252, %s254
      %p261 = scmp.eq.s32.totalorder %s34, 1
      %p262 = por %p260, %p261
      %p263 = scmp.ne.s32.totalorder %s254, %s255
      %p264 = scmp.eq.s32.totalorder %s34, 0
      %p265 = por %p263, %p264
      %p266 = scmp.ne.s32.totalorder %s254, %s255
      %p267 = scmp.eq.s32.totalorder %s35, 1
      %p268 = por %p266, %p267
      %p270 = scmp.ne.s32.totalorder %s255, %s269
      %p271 = scmp.eq.s32.totalorder %s35, 0
      %p272 = por %p270, %p271
      %s274 = sadd.s32 %s273, 1
      %p277 = scmp.eq.s32.totalorder %s29, 1
      %p278 = scmp.ne.s32.totalorder %s273, %s275
      %p279 = scmp.eq.s32.totalorder %s29, 0
      %p280 = por %p278, %p279
      %p281 = scmp.ne.s32.totalorder %s273, %s275
      %p282 = scmp.eq.s32.totalorder %s34, 1
      %p283 = por %p281, %p282
      %p284 = scmp.ne.s32.totalorder %s275, %s276
      %p285 = scmp.eq.s32.totalorder %s34, 0
      %p286 = por %p284, %p285
      %p287 = scmp.ne.s32.totalorder %s275, %s276
      %p288 = scmp.eq.s32.totalorder %s35, 1
      %p289 = por %p287, %p288
      %p291 = scmp.ne.s32.totalorder %s276, %s290
      %p292 = scmp.eq.s32.totalorder %s35, 0
      %p293 = por %p291, %p292
      %s295 = sadd.s32 %s294, 1
      %p298 = scmp.eq.s32.totalorder %s29, 1
      %p299 = scmp.ne.s32.totalorder %s294, %s296
      %p300 = scmp.eq.s32.totalorder %s29, 0
      %p301 = por %p299, %p300
      %p302 = scmp.ne.s32.totalorder %s294, %s296
      %p303 = scmp.eq.s32.totalorder %s34, 1
      %p304 = por %p302, %p303
      %p305 = scmp.ne.s32.totalorder %s296, %s297
      %p306 = scmp.eq.s32.totalorder %s34, 0
      %p307 = por %p305, %p306
      %p308 = scmp.ne.s32.totalorder %s296, %s297
      %p309 = scmp.eq.s32.totalorder %s35, 1
      %p310 = por %p308, %p309
      %p312 = scmp.ne.s32.totalorder %s297, %s311
      %p313 = scmp.eq.s32.totalorder %s35, 0
      %p314 = por %p312, %p313
      %p315 = scmp.le.s32.totalorder 1, %s29
      %p316 = scmp.lt.s32.totalorder %s29, 3
      %p317 = pnand %p315, %p316
      %p318 = pneg %p317
      // Predicated region
      $region9: #{tpu_custom_call.1} parent=5 // pred_check
        _
      $region10: #{tpu_custom_call.1} parent=5 // pred_check_branch
        %320 = sbr.rel (%p317) target = $region12
      $region11: #{tpu_custom_call.1} parent=5 // pred_region
        %s321 = ssub.s32 %s29, 1
        // Predicated region
        $region13: #{tpu_custom_call.1} parent=11 // pred_check
          %p322 = pneg %p50
        $region14: #{tpu_custom_call.1} parent=11 // pred_check_branch
          %324 = sbr.rel (%p322) target = $region16
        $region15: #{tpu_custom_call.1} parent=11 // pred_region
          %s326 = ssub.s32 2048, 2048
          %327 = vsyncadd [#allocation4], %s326
          %s329 = sshll.u32 [#allocation3], 4
          %s330 = int_to_ptr.vmem [resolvable:$true] %s329
          %332 = dma.hbm_to_vmem [thread:$0]  %s0, 2048, %s330, [#allocation4]
        $region16: #{tpu_custom_call.1} parent=11 // pred_fallthru
          _
        // Predicated region
        $region17: #{tpu_custom_call.1} parent=11 // pred_check
          %p333 = pneg %p97
        $region18: #{tpu_custom_call.1} parent=11 // pred_check_branch
          %335 = sbr.rel (%p333) target = $region20
        $region19: #{tpu_custom_call.1} parent=11 // pred_region
          %s337 = ssub.s32 32, 32
          %338 = vsyncadd [#allocation7], %s337
          %s340 = sshll.u32 [#allocation8], 4
          %s341 = int_to_ptr.vmem [resolvable:$true] %s340
          %343 = dma.hbm_to_vmem [thread:$0]  %s2, 32, %s341, [#allocation7]
        $region20: #{tpu_custom_call.1} parent=11 // pred_fallthru
          _
        // Predicated region
        $region21: #{tpu_custom_call.1} parent=11 // pred_check
          %p344 = pneg %p118
        $region22: #{tpu_custom_call.1} parent=11 // pred_check_branch
          %346 = sbr.rel (%p344) target = $region24
        $region23: #{tpu_custom_call.1} parent=11 // pred_region
          %s348 = ssub.s32 8192, 8192
          %349 = vsyncadd [#allocation10], %s348
          %s350 = sshll.u32 [#allocation9], 4
          %s351 = int_to_ptr.vmem [resolvable:$true] %s350
          %356 = dma.hbm_to_vmem [thread:$0]  %s3, 8192, %s351, [#allocation10], 256, 256, 16
        $region24: #{tpu_custom_call.1} parent=11 // pred_fallthru
          _
        // Predicated region
        $region25: #{tpu_custom_call.1} parent=11 // pred_check
          %p357 = pneg %p139
        $region26: #{tpu_custom_call.1} parent=11 // pred_check_branch
          %359 = sbr.rel (%p357) target = $region28
        $region27: #{tpu_custom_call.1} parent=11 // pred_region
          %s361 = ssub.s32 32, 32
          %362 = vsyncadd [#allocation10], %s361
          %s364 = sshll.u32 [#allocation11], 4
          %s365 = int_to_ptr.vmem [resolvable:$true] %s364
          %367 = dma.hbm_to_vmem [thread:$0]  %s4, 32, %s365, [#allocation10]
        $region28: #{tpu_custom_call.1} parent=11 // pred_fallthru
          _
        // Predicated region
        $region29: #{tpu_custom_call.1} parent=11 // pred_check
          %p368 = pneg %p160
        $region30: #{tpu_custom_call.1} parent=11 // pred_check_branch
          %370 = sbr.rel (%p368) target = $region32
        $region31: #{tpu_custom_call.1} parent=11 // pred_region
          %s372 = ssub.s32 32, 32
          %373 = vsyncadd [#allocation13], %s372
          %s375 = sshll.u32 [#allocation12], 4
          %s376 = int_to_ptr.vmem [resolvable:$true] %s375
          %378 = dma.hbm_to_vmem [thread:$0]  %s5, 32, %s376, [#allocation13]
        $region32: #{tpu_custom_call.1} parent=11 // pred_fallthru
          _
        // Predicated region
        $region33: #{tpu_custom_call.1} parent=11 // pred_check
          %p379 = pneg %p181
        $region34: #{tpu_custom_call.1} parent=11 // pred_check_branch
          %381 = sbr.rel (%p379) target = $region36
        $region35: #{tpu_custom_call.1} parent=11 // pred_region
          %s383 = ssub.s32 32, 32
          %384 = vsyncadd [#allocation13], %s383
          %s386 = sshll.u32 [#allocation14], 4
          %s387 = int_to_ptr.vmem [resolvable:$true] %s386
          %389 = dma.hbm_to_vmem [thread:$0]  %s6, 32, %s387, [#allocation13]
        $region36: #{tpu_custom_call.1} parent=11 // pred_fallthru
          _
        // Predicated region
        $region37: #{tpu_custom_call.1} parent=11 // pred_check
          %p390 = pneg %p202
        $region38: #{tpu_custom_call.1} parent=11 // pred_check_branch
          %392 = sbr.rel (%p390) target = $region40
        $region39: #{tpu_custom_call.1} parent=11 // pred_region
          %s394 = ssub.s32 4096, 4096
          %395 = vsyncadd [#allocation16], %s394
          %s396 = sshll.u32 [#allocation15], 4
          %s397 = int_to_ptr.vmem [resolvable:$true] %s396
          %402 = dma.hbm_to_vmem [thread:$0]  %s7, 4096, %s397, [#allocation16], 128, 128, 8
        $region40: #{tpu_custom_call.1} parent=11 // pred_fallthru
          _
        // Predicated region
        $region41: #{tpu_custom_call.1} parent=11 // pred_check
          %p403 = pneg %p223
        $region42: #{tpu_custom_call.1} parent=11 // pred_check_branch
          %405 = sbr.rel (%p403) target = $region44
        $region43: #{tpu_custom_call.1} parent=11 // pred_region
          %s407 = ssub.s32 16, 16
          %408 = vsyncadd [#allocation16], %s407
          %s410 = sshll.u32 [#allocation17], 4
          %s411 = int_to_ptr.vmem [resolvable:$true] %s410
          %413 = dma.hbm_to_vmem [thread:$0]  %s8, 16, %s411, [#allocation16]
        $region44: #{tpu_custom_call.1} parent=11 // pred_fallthru
          _
        // Predicated region
        $region45: #{tpu_custom_call.1} parent=11 // pred_check
          %p414 = pneg %p244
        $region46: #{tpu_custom_call.1} parent=11 // pred_check_branch
          %416 = sbr.rel (%p414) target = $region48
        $region47: #{tpu_custom_call.1} parent=11 // pred_region
          %s418 = ssub.s32 16, 16
          %419 = vsyncadd [#allocation19], %s418
          %s421 = sshll.u32 [#allocation18], 4
          %s422 = int_to_ptr.vmem [resolvable:$true] %s421
          %424 = dma.hbm_to_vmem [thread:$0]  %s9, 16, %s422, [#allocation19]
        $region48: #{tpu_custom_call.1} parent=11 // pred_fallthru
          _
        // Predicated region
        $region49: #{tpu_custom_call.1} parent=11 // pred_check
          %p425 = pneg %p265
        $region50: #{tpu_custom_call.1} parent=11 // pred_check_branch
          %427 = sbr.rel (%p425) target = $region52
        $region51: #{tpu_custom_call.1} parent=11 // pred_region
          %s429 = ssub.s32 16, 16
          %430 = vsyncadd [#allocation19], %s429
          %s432 = sshll.u32 [#allocation20], 4
          %s433 = int_to_ptr.vmem [resolvable:$true] %s432
          %435 = dma.hbm_to_vmem [thread:$0]  %s10, 16, %s433, [#allocation19]
        $region52: #{tpu_custom_call.1} parent=11 // pred_fallthru
          _
      $region12: #{tpu_custom_call.1} parent=5 // pred_fallthru
        _
      %p436 = scmp.lt.s32.totalorder %s29, 2
      // Predicated region
      $region53: #{tpu_custom_call.1} parent=5 // pred_check
        %p437 = pneg %p436
      $region54: #{tpu_custom_call.1} parent=5 // pred_check_branch
        %439 = sbr.rel (%p437) target = $region56
      $region55: #{tpu_custom_call.1} parent=5 // pred_region
        // Predicated region
        $region57: #{tpu_custom_call.1} parent=55 // pred_check
          %p440 = pneg %p70
        $region58: #{tpu_custom_call.1} parent=55 // pred_check_branch
          %442 = sbr.rel (%p440) target = $region60
        $region59: #{tpu_custom_call.1} parent=55 // pred_region
          %s443 = sand.u32 %s29, 1
          %s444 = scalar_lea.sflag [#allocation7], %s443
          %s445 = sand.u32 %s60, 1
          %s446 = smul.addr %s445, 2048
          %s447 = scalar_lea.vmem [#allocation6], %s446
          %s448 = smul.u32 256, %s29
          %s450 = ssub.s32 32768, 32768
          %451 = vsyncadd %s444, %s450
          %s452 = smul.addr %s448, 2
          %s453 = smul.addr %s452, 64
          %s454 = scalar_lea.hbm %s1, %s453
          %s455 = sshll.u32 %s447, 4
          %s456 = int_to_ptr.vmem [resolvable:$true] %s455
          %461 = dma.hbm_to_vmem [thread:$0]  %s454, 32768, %s456, %s444, 128, 128, 8
        $region60: #{tpu_custom_call.1} parent=55 // pred_fallthru
          _
      $region56: #{tpu_custom_call.1} parent=5 // pred_fallthru
        _
      %p462 = scmp.le.s32.totalorder 1, %s29
      %p463 = scmp.lt.s32.totalorder %s29, 3
      %p464 = pnand %p462, %p463
      %p465 = pneg %p464
      // Predicated region
      $region61: #{tpu_custom_call.1} parent=5 // pred_check
        _
      $region62: #{tpu_custom_call.1} parent=5 // pred_check_branch
        %467 = sbr.rel (%p464) target = $region64
      $region63: #{tpu_custom_call.1} parent=5 // pred_region
        %s468 = ssub.s32 %s29, 1
        // Predicated region
        $region65: #{tpu_custom_call.1} parent=63 // pred_check
          %p469 = pneg %p50
        $region66: #{tpu_custom_call.1} parent=63 // pred_check_branch
          %471 = sbr.rel (%p469) target = $region68
        $region67: #{tpu_custom_call.1} parent=63 // pred_region
          %472 = dma.done [#allocation4], 2048
        $region68: #{tpu_custom_call.1} parent=63 // pred_fallthru
          _
        %s473 = sand.u32 %s34, 1
        %s474 = scalar_lea.sflag [#allocation7], %s473
        %s475 = sand.u32 %s63, 1
        %s476 = smul.addr %s475, 2048
        %s477 = scalar_lea.vmem [#allocation6], %s476
        // Predicated region
        $region69: #{tpu_custom_call.1} parent=63 // pred_check
          %p478 = pneg %p76
        $region70: #{tpu_custom_call.1} parent=63 // pred_check_branch
          %480 = sbr.rel (%p478) target = $region72
        $region71: #{tpu_custom_call.1} parent=63 // pred_region
          %481 = dma.done %s474, 32768
        $region72: #{tpu_custom_call.1} parent=63 // pred_fallthru
          _
        // Predicated region
        $region73: #{tpu_custom_call.1} parent=63 // pred_check
          %p482 = pneg %p97
        $region74: #{tpu_custom_call.1} parent=63 // pred_check_branch
          %484 = sbr.rel (%p482) target = $region76
        $region75: #{tpu_custom_call.1} parent=63 // pred_region
          %485 = dma.done [#allocation7], 32
        $region76: #{tpu_custom_call.1} parent=63 // pred_fallthru
          _
        // Predicated region
        $region77: #{tpu_custom_call.1} parent=63 // pred_check
          %p486 = pneg %p118
        $region78: #{tpu_custom_call.1} parent=63 // pred_check_branch
          %488 = sbr.rel (%p486) target = $region80
        $region79: #{tpu_custom_call.1} parent=63 // pred_region
          %489 = dma.done [#allocation10], 8192
        $region80: #{tpu_custom_call.1} parent=63 // pred_fallthru
          _
        // Predicated region
        $region81: #{tpu_custom_call.1} parent=63 // pred_check
          %p490 = pneg %p139
        $region82: #{tpu_custom_call.1} parent=63 // pred_check_branch
          %492 = sbr.rel (%p490) target = $region84
        $region83: #{tpu_custom_call.1} parent=63 // pred_region
          %493 = dma.done [#allocation10], 32
        $region84: #{tpu_custom_call.1} parent=63 // pred_fallthru
          _
        // Predicated region
        $region85: #{tpu_custom_call.1} parent=63 // pred_check
          %p494 = pneg %p160
        $region86: #{tpu_custom_call.1} parent=63 // pred_check_branch
          %496 = sbr.rel (%p494) target = $region88
        $region87: #{tpu_custom_call.1} parent=63 // pred_region
          %497 = dma.done [#allocation13], 32
        $region88: #{tpu_custom_call.1} parent=63 // pred_fallthru
          _
        // Predicated region
        $region89: #{tpu_custom_call.1} parent=63 // pred_check
          %p498 = pneg %p181
        $region90: #{tpu_custom_call.1} parent=63 // pred_check_branch
          %500 = sbr.rel (%p498) target = $region92
        $region91: #{tpu_custom_call.1} parent=63 // pred_region
          %501 = dma.done [#allocation13], 32
        $region92: #{tpu_custom_call.1} parent=63 // pred_fallthru
          _
        // Predicated region
        $region93: #{tpu_custom_call.1} parent=63 // pred_check
          %p502 = pneg %p202
        $region94: #{tpu_custom_call.1} parent=63 // pred_check_branch
          %504 = sbr.rel (%p502) target = $region96
        $region95: #{tpu_custom_call.1} parent=63 // pred_region
          %505 = dma.done [#allocation16], 4096
        $region96: #{tpu_custom_call.1} parent=63 // pred_fallthru
          _
        // Predicated region
        $region97: #{tpu_custom_call.1} parent=63 // pred_check
          %p506 = pneg %p223
        $region98: #{tpu_custom_call.1} parent=63 // pred_check_branch
          %508 = sbr.rel (%p506) target = $region100
        $region99: #{tpu_custom_call.1} parent=63 // pred_region
          %509 = dma.done [#allocation16], 16
        $region100: #{tpu_custom_call.1} parent=63 // pred_fallthru
          _
        // Predicated region
        $region101: #{tpu_custom_call.1} parent=63 // pred_check
          %p510 = pneg %p244
        $region102: #{tpu_custom_call.1} parent=63 // pred_check_branch
          %512 = sbr.rel (%p510) target = $region104
        $region103: #{tpu_custom_call.1} parent=63 // pred_region
          %513 = dma.done [#allocation19], 16
        $region104: #{tpu_custom_call.1} parent=63 // pred_fallthru
          _
        // Predicated region
        $region105: #{tpu_custom_call.1} parent=63 // pred_check
          %p514 = pneg %p265
        $region106: #{tpu_custom_call.1} parent=63 // pred_check_branch
          %516 = sbr.rel (%p514) target = $region108
        $region107: #{tpu_custom_call.1} parent=63 // pred_region
          %517 = dma.done [#allocation19], 16
        $region108: #{tpu_custom_call.1} parent=63 // pred_fallthru
          _
        %p518 = pneg %p50
        %p519 = pneg %p47
        %s520 = sand.u32 %s34, 1
        %s521 = scalar_lea.sflag [#allocation7], %s520
        %s522 = sand.u32 %s63, 1
        %s523 = smul.addr %s522, 2048
        %s524 = scalar_lea.vmem [#allocation6], %s523
        %p525 = pneg %p76
        %p526 = pneg %p73
        %p527 = pneg %p97
        %p528 = pneg %p94
        %p529 = pneg %p118
        %p530 = pneg %p115
        %p531 = pneg %p139
        %p532 = pneg %p136
        %p533 = pneg %p160
        %p534 = pneg %p157
        %p535 = pneg %p181
        %p536 = pneg %p178
        %p537 = pneg %p202
        %p538 = pneg %p199
        %p539 = pneg %p223
        %p540 = pneg %p220
        %p541 = pneg %p244
        %p542 = pneg %p241
        %p543 = pneg %p265
        %p544 = pneg %p262
        %p545 = pneg %p286
        %p546 = pneg %p283
        %p547 = pneg %p307
        %p548 = pneg %p304
        %s549 = smul.u32 256, %s34
        %p550 = scmp.eq.s32.totalorder %s34, 0
        // Predicated region
        $region109: #{tpu_custom_call.1} parent=63 // pred_check
          %p551 = pneg %p550
        $region110: #{tpu_custom_call.1} parent=63 // pred_check_branch
          %553 = sbr.rel (%p551) target = $region112
        $region111: #{tpu_custom_call.1} parent=63 // pred_region
          %v554 = vld [vmem:[#allocation8] sm:$0x3]
          %v556 = vlaneseq
          %v557 = vshrl.u32 %v556, 7
          %v558 = vsub.s32 0, %v557
          %v559 = vrot.slane %v554, %v558
          %v560 = vlaneseq
          %v561 = vshrl.u32 %v560, 7
          %v562 = vsub.s32 1, %v561
          %v563 = vrot.slane %v554, %v562
          %566 = vst [vmem:[#allocation2] sm:$0xff] %v559
          %567 = vst [vmem:[#allocation2 + $0x8] sm:$0xff] %v563
        $region112: #{tpu_custom_call.1} parent=63 // pred_fallthru
          _
        %s568 = smul.u32 %s34, 2048
        %s569 = sshra.s32 %s568, 7
        %s570 = sand.u32 %s568, 127
        %s571 = smul.addr %s569, 4
        %s572 = scalar_lea.vmem [#allocation3], %s571
        %v573 = vld [vmem:[%s572] sm:$0xff]
        %v574 = vld [vmem:[%s572 + $0x8] sm:$0xff]
        %v575 = vld [vmem:[%s572 + $0x10] sm:$0xff]
        %v576 = vld [vmem:[%s572 + $0x18] sm:$0xff]
        %v577 = vld [vmem:[%s572 + $0x20] sm:$0xff]
        %v578 = vld [vmem:[%s572 + $0x28] sm:$0xff]
        %v579 = vld [vmem:[%s572 + $0x30] sm:$0xff]
        %v580 = vld [vmem:[%s572 + $0x38] sm:$0xff]
        %v581 = vld [vmem:[#allocation2] sm:$0xff]
        %v582 = vld [vmem:[#allocation2 + $0x8] sm:$0xff]
        %v583 = vld [vmem:[%s477] sm:$0xff]
        %v584 = vld [vmem:[%s477 + $0x8] sm:$0xff]
        %v585 = vld [vmem:[%s477 + $0x10] sm:$0xff]
        %v586 = vld [vmem:[%s477 + $0x18] sm:$0xff]
        %v587 = vld [vmem:[%s477 + $0x20] sm:$0xff]
        %v588 = vld [vmem:[%s477 + $0x28] sm:$0xff]
        %v589 = vld [vmem:[%s477 + $0x30] sm:$0xff]
        %v590 = vld [vmem:[%s477 + $0x38] sm:$0xff]
        %v591 = vld [vmem:[%s477 + $0x40] sm:$0xff]
        %v592 = vld [vmem:[%s477 + $0x48] sm:$0xff]
        %v593 = vld [vmem:[%s477 + $0x50] sm:$0xff]
        %v594 = vld [vmem:[%s477 + $0x58] sm:$0xff]
        %v595 = vld [vmem:[%s477 + $0x60] sm:$0xff]
        %v596 = vld [vmem:[%s477 + $0x68] sm:$0xff]
        %v597 = vld [vmem:[%s477 + $0x70] sm:$0xff]
        %v598 = vld [vmem:[%s477 + $0x78] sm:$0xff]
        %v599 = vld [vmem:[%s477 + $0x80] sm:$0xff]
        %v600 = vld [vmem:[%s477 + $0x88] sm:$0xff]
        %v601 = vld [vmem:[%s477 + $0x90] sm:$0xff]
        %v602 = vld [vmem:[%s477 + $0x98] sm:$0xff]
        %v603 = vld [vmem:[%s477 + $0xa0] sm:$0xff]
        %v604 = vld [vmem:[%s477 + $0xa8] sm:$0xff]
        %v605 = vld [vmem:[%s477 + $0xb0] sm:$0xff]
        %v606 = vld [vmem:[%s477 + $0xb8] sm:$0xff]
        %v607 = vld [vmem:[%s477 + $0xc0] sm:$0xff]
        %v608 = vld [vmem:[%s477 + $0xc8] sm:$0xff]
        %v609 = vld [vmem:[%s477 + $0xd0] sm:$0xff]
        %v610 = vld [vmem:[%s477 + $0xd8] sm:$0xff]
        %v611 = vld [vmem:[%s477 + $0xe0] sm:$0xff]
        %v612 = vld [vmem:[%s477 + $0xe8] sm:$0xff]
        %v613 = vld [vmem:[%s477 + $0xf0] sm:$0xff]
        %v614 = vld [vmem:[%s477 + $0xf8] sm:$0xff]
        %v615 = vld [vmem:[%s477 + $0x100] sm:$0xff]
        %v616 = vld [vmem:[%s477 + $0x108] sm:$0xff]
        %v617 = vld [vmem:[%s477 + $0x110] sm:$0xff]
        %v618 = vld [vmem:[%s477 + $0x118] sm:$0xff]
        %v619 = vld [vmem:[%s477 + $0x120] sm:$0xff]
        %v620 = vld [vmem:[%s477 + $0x128] sm:$0xff]
        %v621 = vld [vmem:[%s477 + $0x130] sm:$0xff]
        %v622 = vld [vmem:[%s477 + $0x138] sm:$0xff]
        %v623 = vld [vmem:[%s477 + $0x140] sm:$0xff]
        %v624 = vld [vmem:[%s477 + $0x148] sm:$0xff]
        %v625 = vld [vmem:[%s477 + $0x150] sm:$0xff]
        %v626 = vld [vmem:[%s477 + $0x158] sm:$0xff]
        %v627 = vld [vmem:[%s477 + $0x160] sm:$0xff]
        %v628 = vld [vmem:[%s477 + $0x168] sm:$0xff]
        %v629 = vld [vmem:[%s477 + $0x170] sm:$0xff]
        %v630 = vld [vmem:[%s477 + $0x178] sm:$0xff]
        %v631 = vld [vmem:[%s477 + $0x180] sm:$0xff]
        %v632 = vld [vmem:[%s477 + $0x188] sm:$0xff]
        %v633 = vld [vmem:[%s477 + $0x190] sm:$0xff]
        %v634 = vld [vmem:[%s477 + $0x198] sm:$0xff]
        %v635 = vld [vmem:[%s477 + $0x1a0] sm:$0xff]
        %v636 = vld [vmem:[%s477 + $0x1a8] sm:$0xff]
        %v637 = vld [vmem:[%s477 + $0x1b0] sm:$0xff]
        %v638 = vld [vmem:[%s477 + $0x1b8] sm:$0xff]
        %v639 = vld [vmem:[%s477 + $0x1c0] sm:$0xff]
        %v640 = vld [vmem:[%s477 + $0x1c8] sm:$0xff]
        %v641 = vld [vmem:[%s477 + $0x1d0] sm:$0xff]
        %v642 = vld [vmem:[%s477 + $0x1d8] sm:$0xff]
        %v643 = vld [vmem:[%s477 + $0x1e0] sm:$0xff]
        %v644 = vld [vmem:[%s477 + $0x1e8] sm:$0xff]
        %v645 = vld [vmem:[%s477 + $0x1f0] sm:$0xff]
        %v646 = vld [vmem:[%s477 + $0x1f8] sm:$0xff]
        %v647 = vld [vmem:[%s477 + $0x200] sm:$0xff]
        %v648 = vld [vmem:[%s477 + $0x208] sm:$0xff]
        %v649 = vld [vmem:[%s477 + $0x210] sm:$0xff]
        %v650 = vld [vmem:[%s477 + $0x218] sm:$0xff]
        %v651 = vld [vmem:[%s477 + $0x220] sm:$0xff]
        %v652 = vld [vmem:[%s477 + $0x228] sm:$0xff]
        %v653 = vld [vmem:[%s477 + $0x230] sm:$0xff]
        %v654 = vld [vmem:[%s477 + $0x238] sm:$0xff]
        %v655 = vld [vmem:[%s477 + $0x240] sm:$0xff]
        %v656 = vld [vmem:[%s477 + $0x248] sm:$0xff]
        %v657 = vld [vmem:[%s477 + $0x250] sm:$0xff]
        %v658 = vld [vmem:[%s477 + $0x258] sm:$0xff]
        %v659 = vld [vmem:[%s477 + $0x260] sm:$0xff]
        %v660 = vld [vmem:[%s477 + $0x268] sm:$0xff]
        %v661 = vld [vmem:[%s477 + $0x270] sm:$0xff]
        %v662 = vld [vmem:[%s477 + $0x278] sm:$0xff]
        %v663 = vld [vmem:[%s477 + $0x280] sm:$0xff]
        %v664 = vld [vmem:[%s477 + $0x288] sm:$0xff]
        %v665 = vld [vmem:[%s477 + $0x290] sm:$0xff]
        %v666 = vld [vmem:[%s477 + $0x298] sm:$0xff]
        %v667 = vld [vmem:[%s477 + $0x2a0] sm:$0xff]
        %v668 = vld [vmem:[%s477 + $0x2a8] sm:$0xff]
        %v669 = vld [vmem:[%s477 + $0x2b0] sm:$0xff]
        %v670 = vld [vmem:[%s477 + $0x2b8] sm:$0xff]
        %v671 = vld [vmem:[%s477 + $0x2c0] sm:$0xff]
        %v672 = vld [vmem:[%s477 + $0x2c8] sm:$0xff]
        %v673 = vld [vmem:[%s477 + $0x2d0] sm:$0xff]
        %v674 = vld [vmem:[%s477 + $0x2d8] sm:$0xff]
        %v675 = vld [vmem:[%s477 + $0x2e0] sm:$0xff]
        %v676 = vld [vmem:[%s477 + $0x2e8] sm:$0xff]
        %v677 = vld [vmem:[%s477 + $0x2f0] sm:$0xff]
        %v678 = vld [vmem:[%s477 + $0x2f8] sm:$0xff]
        %v679 = vld [vmem:[%s477 + $0x300] sm:$0xff]
        %v680 = vld [vmem:[%s477 + $0x308] sm:$0xff]
        %v681 = vld [vmem:[%s477 + $0x310] sm:$0xff]
        %v682 = vld [vmem:[%s477 + $0x318] sm:$0xff]
        %v683 = vld [vmem:[%s477 + $0x320] sm:$0xff]
        %v684 = vld [vmem:[%s477 + $0x328] sm:$0xff]
        %v685 = vld [vmem:[%s477 + $0x330] sm:$0xff]
        %v686 = vld [vmem:[%s477 + $0x338] sm:$0xff]
        %v687 = vld [vmem:[%s477 + $0x340] sm:$0xff]
        %v688 = vld [vmem:[%s477 + $0x348] sm:$0xff]
        %v689 = vld [vmem:[%s477 + $0x350] sm:$0xff]
        %v690 = vld [vmem:[%s477 + $0x358] sm:$0xff]
        %v691 = vld [vmem:[%s477 + $0x360] sm:$0xff]
        %v692 = vld [vmem:[%s477 + $0x368] sm:$0xff]
        %v693 = vld [vmem:[%s477 + $0x370] sm:$0xff]
        %v694 = vld [vmem:[%s477 + $0x378] sm:$0xff]
        %v695 = vld [vmem:[%s477 + $0x380] sm:$0xff]
        %v696 = vld [vmem:[%s477 + $0x388] sm:$0xff]
        %v697 = vld [vmem:[%s477 + $0x390] sm:$0xff]
        %v698 = vld [vmem:[%s477 + $0x398] sm:$0xff]
        %v699 = vld [vmem:[%s477 + $0x3a0] sm:$0xff]
        %v700 = vld [vmem:[%s477 + $0x3a8] sm:$0xff]
        %v701 = vld [vmem:[%s477 + $0x3b0] sm:$0xff]
        %v702 = vld [vmem:[%s477 + $0x3b8] sm:$0xff]
        %v703 = vld [vmem:[%s477 + $0x3c0] sm:$0xff]
        %v704 = vld [vmem:[%s477 + $0x3c8] sm:$0xff]
        %v705 = vld [vmem:[%s477 + $0x3d0] sm:$0xff]
        %v706 = vld [vmem:[%s477 + $0x3d8] sm:$0xff]
        %v707 = vld [vmem:[%s477 + $0x3e0] sm:$0xff]
        %v708 = vld [vmem:[%s477 + $0x3e8] sm:$0xff]
        %v709 = vld [vmem:[%s477 + $0x3f0] sm:$0xff]
        %v710 = vld [vmem:[%s477 + $0x3f8] sm:$0xff]
        %v711 = vld [vmem:[%s477 + $0x400] sm:$0xff]
        %v712 = vld [vmem:[%s477 + $0x408] sm:$0xff]
        %v713 = vld [vmem:[%s477 + $0x410] sm:$0xff]
        %v714 = vld [vmem:[%s477 + $0x418] sm:$0xff]
        %v715 = vld [vmem:[%s477 + $0x420] sm:$0xff]
        %v716 = vld [vmem:[%s477 + $0x428] sm:$0xff]
        %v717 = vld [vmem:[%s477 + $0x430] sm:$0xff]
        %v718 = vld [vmem:[%s477 + $0x438] sm:$0xff]
        %v719 = vld [vmem:[%s477 + $0x440] sm:$0xff]
        %v720 = vld [vmem:[%s477 + $0x448] sm:$0xff]
        %v721 = vld [vmem:[%s477 + $0x450] sm:$0xff]
        %v722 = vld [vmem:[%s477 + $0x458] sm:$0xff]
        %v723 = vld [vmem:[%s477 + $0x460] sm:$0xff]
        %v724 = vld [vmem:[%s477 + $0x468] sm:$0xff]
        %v725 = vld [vmem:[%s477 + $0x470] sm:$0xff]
        %v726 = vld [vmem:[%s477 + $0x478] sm:$0xff]
        %v727 = vld [vmem:[%s477 + $0x480] sm:$0xff]
        %v728 = vld [vmem:[%s477 + $0x488] sm:$0xff]
        %v729 = vld [vmem:[%s477 + $0x490] sm:$0xff]
        %v730 = vld [vmem:[%s477 + $0x498] sm:$0xff]
        %v731 = vld [vmem:[%s477 + $0x4a0] sm:$0xff]
        %v732 = vld [vmem:[%s477 + $0x4a8] sm:$0xff]
        %v733 = vld [vmem:[%s477 + $0x4b0] sm:$0xff]
        %v734 = vld [vmem:[%s477 + $0x4b8] sm:$0xff]
        %v735 = vld [vmem:[%s477 + $0x4c0] sm:$0xff]
        %v736 = vld [vmem:[%s477 + $0x4c8] sm:$0xff]
        %v737 = vld [vmem:[%s477 + $0x4d0] sm:$0xff]
        %v738 = vld [vmem:[%s477 + $0x4d8] sm:$0xff]
        %v739 = vld [vmem:[%s477 + $0x4e0] sm:$0xff]
        %v740 = vld [vmem:[%s477 + $0x4e8] sm:$0xff]
        %v741 = vld [vmem:[%s477 + $0x4f0] sm:$0xff]
        %v742 = vld [vmem:[%s477 + $0x4f8] sm:$0xff]
        %v743 = vld [vmem:[%s477 + $0x500] sm:$0xff]
        %v744 = vld [vmem:[%s477 + $0x508] sm:$0xff]
        %v745 = vld [vmem:[%s477 + $0x510] sm:$0xff]
        %v746 = vld [vmem:[%s477 + $0x518] sm:$0xff]
        %v747 = vld [vmem:[%s477 + $0x520] sm:$0xff]
        %v748 = vld [vmem:[%s477 + $0x528] sm:$0xff]
        %v749 = vld [vmem:[%s477 + $0x530] sm:$0xff]
        %v750 = vld [vmem:[%s477 + $0x538] sm:$0xff]
        %v751 = vld [vmem:[%s477 + $0x540] sm:$0xff]
        %v752 = vld [vmem:[%s477 + $0x548] sm:$0xff]
        %v753 = vld [vmem:[%s477 + $0x550] sm:$0xff]
        %v754 = vld [vmem:[%s477 + $0x558] sm:$0xff]
        %v755 = vld [vmem:[%s477 + $0x560] sm:$0xff]
        %v756 = vld [vmem:[%s477 + $0x568] sm:$0xff]
        %v757 = vld [vmem:[%s477 + $0x570] sm:$0xff]
        %v758 = vld [vmem:[%s477 + $0x578] sm:$0xff]
        %v759 = vld [vmem:[%s477 + $0x580] sm:$0xff]
        %v760 = vld [vmem:[%s477 + $0x588] sm:$0xff]
        %v761 = vld [vmem:[%s477 + $0x590] sm:$0xff]
        %v762 = vld [vmem:[%s477 + $0x598] sm:$0xff]
        %v763 = vld [vmem:[%s477 + $0x5a0] sm:$0xff]
        %v764 = vld [vmem:[%s477 + $0x5a8] sm:$0xff]
        %v765 = vld [vmem:[%s477 + $0x5b0] sm:$0xff]
        %v766 = vld [vmem:[%s477 + $0x5b8] sm:$0xff]
        %v767 = vld [vmem:[%s477 + $0x5c0] sm:$0xff]
        %v768 = vld [vmem:[%s477 + $0x5c8] sm:$0xff]
        %v769 = vld [vmem:[%s477 + $0x5d0] sm:$0xff]
        %v770 = vld [vmem:[%s477 + $0x5d8] sm:$0xff]
        %v771 = vld [vmem:[%s477 + $0x5e0] sm:$0xff]
        %v772 = vld [vmem:[%s477 + $0x5e8] sm:$0xff]
        %v773 = vld [vmem:[%s477 + $0x5f0] sm:$0xff]
        %v774 = vld [vmem:[%s477 + $0x5f8] sm:$0xff]
        %v775 = vld [vmem:[%s477 + $0x600] sm:$0xff]
        %v776 = vld [vmem:[%s477 + $0x608] sm:$0xff]
        %v777 = vld [vmem:[%s477 + $0x610] sm:$0xff]
        %v778 = vld [vmem:[%s477 + $0x618] sm:$0xff]
        %v779 = vld [vmem:[%s477 + $0x620] sm:$0xff]
        %v780 = vld [vmem:[%s477 + $0x628] sm:$0xff]
        %v781 = vld [vmem:[%s477 + $0x630] sm:$0xff]
        %v782 = vld [vmem:[%s477 + $0x638] sm:$0xff]
        %v783 = vld [vmem:[%s477 + $0x640] sm:$0xff]
        %v784 = vld [vmem:[%s477 + $0x648] sm:$0xff]
        %v785 = vld [vmem:[%s477 + $0x650] sm:$0xff]
        %v786 = vld [vmem:[%s477 + $0x658] sm:$0xff]
        %v787 = vld [vmem:[%s477 + $0x660] sm:$0xff]
        %v788 = vld [vmem:[%s477 + $0x668] sm:$0xff]
        %v789 = vld [vmem:[%s477 + $0x670] sm:$0xff]
        %v790 = vld [vmem:[%s477 + $0x678] sm:$0xff]
        %v791 = vld [vmem:[%s477 + $0x680] sm:$0xff]
        %v792 = vld [vmem:[%s477 + $0x688] sm:$0xff]
        %v793 = vld [vmem:[%s477 + $0x690] sm:$0xff]
        %v794 = vld [vmem:[%s477 + $0x698] sm:$0xff]
        %v795 = vld [vmem:[%s477 + $0x6a0] sm:$0xff]
        %v796 = vld [vmem:[%s477 + $0x6a8] sm:$0xff]
        %v797 = vld [vmem:[%s477 + $0x6b0] sm:$0xff]
        %v798 = vld [vmem:[%s477 + $0x6b8] sm:$0xff]
        %v799 = vld [vmem:[%s477 + $0x6c0] sm:$0xff]
        %v800 = vld [vmem:[%s477 + $0x6c8] sm:$0xff]
        %v801 = vld [vmem:[%s477 + $0x6d0] sm:$0xff]
        %v802 = vld [vmem:[%s477 + $0x6d8] sm:$0xff]
        %v803 = vld [vmem:[%s477 + $0x6e0] sm:$0xff]
        %v804 = vld [vmem:[%s477 + $0x6e8] sm:$0xff]
        %v805 = vld [vmem:[%s477 + $0x6f0] sm:$0xff]
        %v806 = vld [vmem:[%s477 + $0x6f8] sm:$0xff]
        %v807 = vld [vmem:[%s477 + $0x700] sm:$0xff]
        %v808 = vld [vmem:[%s477 + $0x708] sm:$0xff]
        %v809 = vld [vmem:[%s477 + $0x710] sm:$0xff]
        %v810 = vld [vmem:[%s477 + $0x718] sm:$0xff]
        %v811 = vld [vmem:[%s477 + $0x720] sm:$0xff]
        %v812 = vld [vmem:[%s477 + $0x728] sm:$0xff]
        %v813 = vld [vmem:[%s477 + $0x730] sm:$0xff]
        %v814 = vld [vmem:[%s477 + $0x738] sm:$0xff]
        %v815 = vld [vmem:[%s477 + $0x740] sm:$0xff]
        %v816 = vld [vmem:[%s477 + $0x748] sm:$0xff]
        %v817 = vld [vmem:[%s477 + $0x750] sm:$0xff]
        %v818 = vld [vmem:[%s477 + $0x758] sm:$0xff]
        %v819 = vld [vmem:[%s477 + $0x760] sm:$0xff]
        %v820 = vld [vmem:[%s477 + $0x768] sm:$0xff]
        %v821 = vld [vmem:[%s477 + $0x770] sm:$0xff]
        %v822 = vld [vmem:[%s477 + $0x778] sm:$0xff]
        %v823 = vld [vmem:[%s477 + $0x780] sm:$0xff]
        %v824 = vld [vmem:[%s477 + $0x788] sm:$0xff]
        %v825 = vld [vmem:[%s477 + $0x790] sm:$0xff]
        %v826 = vld [vmem:[%s477 + $0x798] sm:$0xff]
        %v827 = vld [vmem:[%s477 + $0x7a0] sm:$0xff]
        %v828 = vld [vmem:[%s477 + $0x7a8] sm:$0xff]
        %v829 = vld [vmem:[%s477 + $0x7b0] sm:$0xff]
        %v830 = vld [vmem:[%s477 + $0x7b8] sm:$0xff]
        %v831 = vld [vmem:[%s477 + $0x7c0] sm:$0xff]
        %v832 = vld [vmem:[%s477 + $0x7c8] sm:$0xff]
        %v833 = vld [vmem:[%s477 + $0x7d0] sm:$0xff]
        %v834 = vld [vmem:[%s477 + $0x7d8] sm:$0xff]
        %v835 = vld [vmem:[%s477 + $0x7e0] sm:$0xff]
        %v836 = vld [vmem:[%s477 + $0x7e8] sm:$0xff]
        %v837 = vld [vmem:[%s477 + $0x7f0] sm:$0xff]
        %v838 = vld [vmem:[%s477 + $0x7f8] sm:$0xff]
        %v847 = vunpack.c.l.b16 %v573
        %v848 = vunpack.c.h.b16 %v573
        %v849 = vunpack.c.l.b16 %v574
        %v850 = vunpack.c.h.b16 %v574
        %v851 = vunpack.c.l.b16 %v575
        %v852 = vunpack.c.h.b16 %v575
        %v853 = vunpack.c.l.b16 %v576
        %v854 = vunpack.c.h.b16 %v576
        %v855 = vunpack.c.l.b16 %v577
        %v856 = vunpack.c.h.b16 %v577
        %v857 = vunpack.c.l.b16 %v578
        %v858 = vunpack.c.h.b16 %v578
        %v859 = vunpack.c.l.b16 %v579
        %v860 = vunpack.c.h.b16 %v579
        %v861 = vunpack.c.l.b16 %v580
        %v862 = vunpack.c.h.b16 %v580
        %v863 = vpack.c.b16 %v847, %v847
        %v864 = vpack.c.b16 %v848, %v848
        %v865 = vpack.c.b16 %v849, %v849
        %v866 = vpack.c.b16 %v850, %v850
        %v867 = vpack.c.b16 %v851, %v851
        %v868 = vpack.c.b16 %v852, %v852
        %v869 = vpack.c.b16 %v853, %v853
        %v870 = vpack.c.b16 %v854, %v854
        %v871 = vpack.c.b16 %v855, %v855
        %v872 = vpack.c.b16 %v856, %v856
        %v873 = vpack.c.b16 %v857, %v857
        %v874 = vpack.c.b16 %v858, %v858
        %v875 = vpack.c.b16 %v859, %v859
        %v876 = vpack.c.b16 %v860, %v860
        %v877 = vpack.c.b16 %v861, %v861
        %v878 = vpack.c.b16 %v862, %v862
        %v1151 = vunpack.c.l.b16 %v583
        %v1152 = vunpack.c.h.b16 %v583
        %v1153 = vunpack.c.l.b16 %v584
        %v1154 = vunpack.c.h.b16 %v584
        %v1155 = vunpack.c.l.b16 %v585
        %v1156 = vunpack.c.h.b16 %v585
        %v1157 = vunpack.c.l.b16 %v586
        %v1158 = vunpack.c.h.b16 %v586
        %v1159 = vunpack.c.l.b16 %v587
        %v1160 = vunpack.c.h.b16 %v587
        %v1161 = vunpack.c.l.b16 %v588
        %v1162 = vunpack.c.h.b16 %v588
        %v1163 = vunpack.c.l.b16 %v589
        %v1164 = vunpack.c.h.b16 %v589
        %v1165 = vunpack.c.l.b16 %v590
        %v1166 = vunpack.c.h.b16 %v590
        %v1167 = vunpack.c.l.b16 %v591
        %v1168 = vunpack.c.h.b16 %v591
        %v1169 = vunpack.c.l.b16 %v592
        %v1170 = vunpack.c.h.b16 %v592
        %v1171 = vunpack.c.l.b16 %v593
        %v1172 = vunpack.c.h.b16 %v593
        %v1173 = vunpack.c.l.b16 %v594
        %v1174 = vunpack.c.h.b16 %v594
        %v1175 = vunpack.c.l.b16 %v595
        %v1176 = vunpack.c.h.b16 %v595
        %v1177 = vunpack.c.l.b16 %v596
        %v1178 = vunpack.c.h.b16 %v596
        %v1179 = vunpack.c.l.b16 %v597
        %v1180 = vunpack.c.h.b16 %v597
        %v1181 = vunpack.c.l.b16 %v598
        %v1182 = vunpack.c.h.b16 %v598
        %v1183 = vunpack.c.l.b16 %v599
        %v1184 = vunpack.c.h.b16 %v599
        %v1185 = vunpack.c.l.b16 %v600
        %v1186 = vunpack.c.h.b16 %v600
        %v1187 = vunpack.c.l.b16 %v601
        %v1188 = vunpack.c.h.b16 %v601
        %v1189 = vunpack.c.l.b16 %v602
        %v1190 = vunpack.c.h.b16 %v602
        %v1191 = vunpack.c.l.b16 %v603
        %v1192 = vunpack.c.h.b16 %v603
        %v1193 = vunpack.c.l.b16 %v604
        %v1194 = vunpack.c.h.b16 %v604
        %v1195 = vunpack.c.l.b16 %v605
        %v1196 = vunpack.c.h.b16 %v605
        %v1197 = vunpack.c.l.b16 %v606
        %v1198 = vunpack.c.h.b16 %v606
        %v1199 = vunpack.c.l.b16 %v607
        %v1200 = vunpack.c.h.b16 %v607
        %v1201 = vunpack.c.l.b16 %v608
        %v1202 = vunpack.c.h.b16 %v608
        %v1203 = vunpack.c.l.b16 %v609
        %v1204 = vunpack.c.h.b16 %v609
        %v1205 = vunpack.c.l.b16 %v610
        %v1206 = vunpack.c.h.b16 %v610
        %v1207 = vunpack.c.l.b16 %v611
        %v1208 = vunpack.c.h.b16 %v611
        %v1209 = vunpack.c.l.b16 %v612
        %v1210 = vunpack.c.h.b16 %v612
        %v1211 = vunpack.c.l.b16 %v613
        %v1212 = vunpack.c.h.b16 %v613
        %v1213 = vunpack.c.l.b16 %v614
        %v1214 = vunpack.c.h.b16 %v614
        %v1215 = vunpack.c.l.b16 %v615
        %v1216 = vunpack.c.h.b16 %v615
        %v1217 = vunpack.c.l.b16 %v616
        %v1218 = vunpack.c.h.b16 %v616
        %v1219 = vunpack.c.l.b16 %v617
        %v1220 = vunpack.c.h.b16 %v617
        %v1221 = vunpack.c.l.b16 %v618
        %v1222 = vunpack.c.h.b16 %v618
        %v1223 = vunpack.c.l.b16 %v619
        %v1224 = vunpack.c.h.b16 %v619
        %v1225 = vunpack.c.l.b16 %v620
        %v1226 = vunpack.c.h.b16 %v620
        %v1227 = vunpack.c.l.b16 %v621
        %v1228 = vunpack.c.h.b16 %v621
        %v1229 = vunpack.c.l.b16 %v622
        %v1230 = vunpack.c.h.b16 %v622
        %v1231 = vunpack.c.l.b16 %v623
        %v1232 = vunpack.c.h.b16 %v623
        %v1233 = vunpack.c.l.b16 %v624
        %v1234 = vunpack.c.h.b16 %v624
        %v1235 = vunpack.c.l.b16 %v625
        %v1236 = vunpack.c.h.b16 %v625
        %v1237 = vunpack.c.l.b16 %v626
        %v1238 = vunpack.c.h.b16 %v626
        %v1239 = vunpack.c.l.b16 %v627
        %v1240 = vunpack.c.h.b16 %v627
        %v1241 = vunpack.c.l.b16 %v628
        %v1242 = vunpack.c.h.b16 %v628
        %v1243 = vunpack.c.l.b16 %v629
        %v1244 = vunpack.c.h.b16 %v629
        %v1245 = vunpack.c.l.b16 %v630
        %v1246 = vunpack.c.h.b16 %v630
        %v1247 = vunpack.c.l.b16 %v631
        %v1248 = vunpack.c.h.b16 %v631
        %v1249 = vunpack.c.l.b16 %v632
        %v1250 = vunpack.c.h.b16 %v632
        %v1251 = vunpack.c.l.b16 %v633
        %v1252 = vunpack.c.h.b16 %v633
        %v1253 = vunpack.c.l.b16 %v634
        %v1254 = vunpack.c.h.b16 %v634
        %v1255 = vunpack.c.l.b16 %v635
        %v1256 = vunpack.c.h.b16 %v635
        %v1257 = vunpack.c.l.b16 %v636
        %v1258 = vunpack.c.h.b16 %v636
        %v1259 = vunpack.c.l.b16 %v637
        %v1260 = vunpack.c.h.b16 %v637
        %v1261 = vunpack.c.l.b16 %v638
        %v1262 = vunpack.c.h.b16 %v638
        %v1263 = vunpack.c.l.b16 %v639
        %v1264 = vunpack.c.h.b16 %v639
        %v1265 = vunpack.c.l.b16 %v640
        %v1266 = vunpack.c.h.b16 %v640
        %v1267 = vunpack.c.l.b16 %v641
        %v1268 = vunpack.c.h.b16 %v641
        %v1269 = vunpack.c.l.b16 %v642
        %v1270 = vunpack.c.h.b16 %v642
        %v1271 = vunpack.c.l.b16 %v643
        %v1272 = vunpack.c.h.b16 %v643
        %v1273 = vunpack.c.l.b16 %v644
        %v1274 = vunpack.c.h.b16 %v644
        %v1275 = vunpack.c.l.b16 %v645
        %v1276 = vunpack.c.h.b16 %v645
        %v1277 = vunpack.c.l.b16 %v646
        %v1278 = vunpack.c.h.b16 %v646
        %v1279 = vunpack.c.l.b16 %v647
        %v1280 = vunpack.c.h.b16 %v647
        %v1281 = vunpack.c.l.b16 %v648
        %v1282 = vunpack.c.h.b16 %v648
        %v1283 = vunpack.c.l.b16 %v649
        %v1284 = vunpack.c.h.b16 %v649
        %v1285 = vunpack.c.l.b16 %v650
        %v1286 = vunpack.c.h.b16 %v650
        %v1287 = vunpack.c.l.b16 %v651
        %v1288 = vunpack.c.h.b16 %v651
        %v1289 = vunpack.c.l.b16 %v652
        %v1290 = vunpack.c.h.b16 %v652
        %v1291 = vunpack.c.l.b16 %v653
        %v1292 = vunpack.c.h.b16 %v653
        %v1293 = vunpack.c.l.b16 %v654
        %v1294 = vunpack.c.h.b16 %v654
        %v1295 = vunpack.c.l.b16 %v655
        %v1296 = vunpack.c.h.b16 %v655
        %v1297 = vunpack.c.l.b16 %v656
        %v1298 = vunpack.c.h.b16 %v656
        %v1299 = vunpack.c.l.b16 %v657
        %v1300 = vunpack.c.h.b16 %v657
        %v1301 = vunpack.c.l.b16 %v658
        %v1302 = vunpack.c.h.b16 %v658
        %v1303 = vunpack.c.l.b16 %v659
        %v1304 = vunpack.c.h.b16 %v659
        %v1305 = vunpack.c.l.b16 %v660
        %v1306 = vunpack.c.h.b16 %v660
        %v1307 = vunpack.c.l.b16 %v661
        %v1308 = vunpack.c.h.b16 %v661
        %v1309 = vunpack.c.l.b16 %v662
        %v1310 = vunpack.c.h.b16 %v662
        %v1311 = vunpack.c.l.b16 %v663
        %v1312 = vunpack.c.h.b16 %v663
        %v1313 = vunpack.c.l.b16 %v664
        %v1314 = vunpack.c.h.b16 %v664
        %v1315 = vunpack.c.l.b16 %v665
        %v1316 = vunpack.c.h.b16 %v665
        %v1317 = vunpack.c.l.b16 %v666
        %v1318 = vunpack.c.h.b16 %v666
        %v1319 = vunpack.c.l.b16 %v667
        %v1320 = vunpack.c.h.b16 %v667
        %v1321 = vunpack.c.l.b16 %v668
        %v1322 = vunpack.c.h.b16 %v668
        %v1323 = vunpack.c.l.b16 %v669
        %v1324 = vunpack.c.h.b16 %v669
        %v1325 = vunpack.c.l.b16 %v670
        %v1326 = vunpack.c.h.b16 %v670
        %v1327 = vunpack.c.l.b16 %v671
        %v1328 = vunpack.c.h.b16 %v671
        %v1329 = vunpack.c.l.b16 %v672
        %v1330 = vunpack.c.h.b16 %v672
        %v1331 = vunpack.c.l.b16 %v673
        %v1332 = vunpack.c.h.b16 %v673
        %v1333 = vunpack.c.l.b16 %v674
        %v1334 = vunpack.c.h.b16 %v674
        %v1335 = vunpack.c.l.b16 %v675
        %v1336 = vunpack.c.h.b16 %v675
        %v1337 = vunpack.c.l.b16 %v676
        %v1338 = vunpack.c.h.b16 %v676
        %v1339 = vunpack.c.l.b16 %v677
        %v1340 = vunpack.c.h.b16 %v677
        %v1341 = vunpack.c.l.b16 %v678
        %v1342 = vunpack.c.h.b16 %v678
        %v1343 = vunpack.c.l.b16 %v679
        %v1344 = vunpack.c.h.b16 %v679
        %v1345 = vunpack.c.l.b16 %v680
        %v1346 = vunpack.c.h.b16 %v680
        %v1347 = vunpack.c.l.b16 %v681
        %v1348 = vunpack.c.h.b16 %v681
        %v1349 = vunpack.c.l.b16 %v682
        %v1350 = vunpack.c.h.b16 %v682
        %v1351 = vunpack.c.l.b16 %v683
        %v1352 = vunpack.c.h.b16 %v683
        %v1353 = vunpack.c.l.b16 %v684
        %v1354 = vunpack.c.h.b16 %v684
        %v1355 = vunpack.c.l.b16 %v685
        %v1356 = vunpack.c.h.b16 %v685
        %v1357 = vunpack.c.l.b16 %v686
        %v1358 = vunpack.c.h.b16 %v686
        %v1359 = vunpack.c.l.b16 %v687
        %v1360 = vunpack.c.h.b16 %v687
        %v1361 = vunpack.c.l.b16 %v688
        %v1362 = vunpack.c.h.b16 %v688
        %v1363 = vunpack.c.l.b16 %v689
        %v1364 = vunpack.c.h.b16 %v689
        %v1365 = vunpack.c.l.b16 %v690
        %v1366 = vunpack.c.h.b16 %v690
        %v1367 = vunpack.c.l.b16 %v691
        %v1368 = vunpack.c.h.b16 %v691
        %v1369 = vunpack.c.l.b16 %v692
        %v1370 = vunpack.c.h.b16 %v692
        %v1371 = vunpack.c.l.b16 %v693
        %v1372 = vunpack.c.h.b16 %v693
        %v1373 = vunpack.c.l.b16 %v694
        %v1374 = vunpack.c.h.b16 %v694
        %v1375 = vunpack.c.l.b16 %v695
        %v1376 = vunpack.c.h.b16 %v695
        %v1377 = vunpack.c.l.b16 %v696
        %v1378 = vunpack.c.h.b16 %v696
        %v1379 = vunpack.c.l.b16 %v697
        %v1380 = vunpack.c.h.b16 %v697
        %v1381 = vunpack.c.l.b16 %v698
        %v1382 = vunpack.c.h.b16 %v698
        %v1383 = vunpack.c.l.b16 %v699
        %v1384 = vunpack.c.h.b16 %v699
        %v1385 = vunpack.c.l.b16 %v700
        %v1386 = vunpack.c.h.b16 %v700
        %v1387 = vunpack.c.l.b16 %v701
        %v1388 = vunpack.c.h.b16 %v701
        %v1389 = vunpack.c.l.b16 %v702
        %v1390 = vunpack.c.h.b16 %v702
        %v1391 = vunpack.c.l.b16 %v703
        %v1392 = vunpack.c.h.b16 %v703
        %v1393 = vunpack.c.l.b16 %v704
        %v1394 = vunpack.c.h.b16 %v704
        %v1395 = vunpack.c.l.b16 %v705
        %v1396 = vunpack.c.h.b16 %v705
        %v1397 = vunpack.c.l.b16 %v706
        %v1398 = vunpack.c.h.b16 %v706
        %v1399 = vunpack.c.l.b16 %v707
        %v1400 = vunpack.c.h.b16 %v707
        %v1401 = vunpack.c.l.b16 %v708
        %v1402 = vunpack.c.h.b16 %v708
        %v1403 = vunpack.c.l.b16 %v709
        %v1404 = vunpack.c.h.b16 %v709
        %v1405 = vunpack.c.l.b16 %v710
        %v1406 = vunpack.c.h.b16 %v710
        %v1407 = vunpack.c.l.b16 %v711
        %v1408 = vunpack.c.h.b16 %v711
        %v1409 = vunpack.c.l.b16 %v712
        %v1410 = vunpack.c.h.b16 %v712
        %v1411 = vunpack.c.l.b16 %v713
        %v1412 = vunpack.c.h.b16 %v713
        %v1413 = vunpack.c.l.b16 %v714
        %v1414 = vunpack.c.h.b16 %v714
        %v1415 = vunpack.c.l.b16 %v715
        %v1416 = vunpack.c.h.b16 %v715
        %v1417 = vunpack.c.l.b16 %v716
        %v1418 = vunpack.c.h.b16 %v716
        %v1419 = vunpack.c.l.b16 %v717
        %v1420 = vunpack.c.h.b16 %v717
        %v1421 = vunpack.c.l.b16 %v718
        %v1422 = vunpack.c.h.b16 %v718
        %v1423 = vunpack.c.l.b16 %v719
        %v1424 = vunpack.c.h.b16 %v719
        %v1425 = vunpack.c.l.b16 %v720
        %v1426 = vunpack.c.h.b16 %v720
        %v1427 = vunpack.c.l.b16 %v721
        %v1428 = vunpack.c.h.b16 %v721
        %v1429 = vunpack.c.l.b16 %v722
        %v1430 = vunpack.c.h.b16 %v722
        %v1431 = vunpack.c.l.b16 %v723
        %v1432 = vunpack.c.h.b16 %v723
        %v1433 = vunpack.c.l.b16 %v724
        %v1434 = vunpack.c.h.b16 %v724
        %v1435 = vunpack.c.l.b16 %v725
        %v1436 = vunpack.c.h.b16 %v725
        %v1437 = vunpack.c.l.b16 %v726
        %v1438 = vunpack.c.h.b16 %v726
        %v1439 = vunpack.c.l.b16 %v727
        %v1440 = vunpack.c.h.b16 %v727
        %v1441 = vunpack.c.l.b16 %v728
        %v1442 = vunpack.c.h.b16 %v728
        %v1443 = vunpack.c.l.b16 %v729
        %v1444 = vunpack.c.h.b16 %v729
        %v1445 = vunpack.c.l.b16 %v730
        %v1446 = vunpack.c.h.b16 %v730
        %v1447 = vunpack.c.l.b16 %v731
        %v1448 = vunpack.c.h.b16 %v731
        %v1449 = vunpack.c.l.b16 %v732
        %v1450 = vunpack.c.h.b16 %v732
        %v1451 = vunpack.c.l.b16 %v733
        %v1452 = vunpack.c.h.b16 %v733
        %v1453 = vunpack.c.l.b16 %v734
        %v1454 = vunpack.c.h.b16 %v734
        %v1455 = vunpack.c.l.b16 %v735
        %v1456 = vunpack.c.h.b16 %v735
        %v1457 = vunpack.c.l.b16 %v736
        %v1458 = vunpack.c.h.b16 %v736
        %v1459 = vunpack.c.l.b16 %v737
        %v1460 = vunpack.c.h.b16 %v737
        %v1461 = vunpack.c.l.b16 %v738
        %v1462 = vunpack.c.h.b16 %v738
        %v1463 = vunpack.c.l.b16 %v739
        %v1464 = vunpack.c.h.b16 %v739
        %v1465 = vunpack.c.l.b16 %v740
        %v1466 = vunpack.c.h.b16 %v740
        %v1467 = vunpack.c.l.b16 %v741
        %v1468 = vunpack.c.h.b16 %v741
        %v1469 = vunpack.c.l.b16 %v742
        %v1470 = vunpack.c.h.b16 %v742
        %v1471 = vunpack.c.l.b16 %v743
        %v1472 = vunpack.c.h.b16 %v743
        %v1473 = vunpack.c.l.b16 %v744
        %v1474 = vunpack.c.h.b16 %v744
        %v1475 = vunpack.c.l.b16 %v745
        %v1476 = vunpack.c.h.b16 %v745
        %v1477 = vunpack.c.l.b16 %v746
        %v1478 = vunpack.c.h.b16 %v746
        %v1479 = vunpack.c.l.b16 %v747
        %v1480 = vunpack.c.h.b16 %v747
        %v1481 = vunpack.c.l.b16 %v748
        %v1482 = vunpack.c.h.b16 %v748
        %v1483 = vunpack.c.l.b16 %v749
        %v1484 = vunpack.c.h.b16 %v749
        %v1485 = vunpack.c.l.b16 %v750
        %v1486 = vunpack.c.h.b16 %v750
        %v1487 = vunpack.c.l.b16 %v751
        %v1488 = vunpack.c.h.b16 %v751
        %v1489 = vunpack.c.l.b16 %v752
        %v1490 = vunpack.c.h.b16 %v752
        %v1491 = vunpack.c.l.b16 %v753
        %v1492 = vunpack.c.h.b16 %v753
        %v1493 = vunpack.c.l.b16 %v754
        %v1494 = vunpack.c.h.b16 %v754
        %v1495 = vunpack.c.l.b16 %v755
        %v1496 = vunpack.c.h.b16 %v755
        %v1497 = vunpack.c.l.b16 %v756
        %v1498 = vunpack.c.h.b16 %v756
        %v1499 = vunpack.c.l.b16 %v757
        %v1500 = vunpack.c.h.b16 %v757
        %v1501 = vunpack.c.l.b16 %v758
        %v1502 = vunpack.c.h.b16 %v758
        %v1503 = vunpack.c.l.b16 %v759
        %v1504 = vunpack.c.h.b16 %v759
        %v1505 = vunpack.c.l.b16 %v760
        %v1506 = vunpack.c.h.b16 %v760
        %v1507 = vunpack.c.l.b16 %v761
        %v1508 = vunpack.c.h.b16 %v761
        %v1509 = vunpack.c.l.b16 %v762
        %v1510 = vunpack.c.h.b16 %v762
        %v1511 = vunpack.c.l.b16 %v763
        %v1512 = vunpack.c.h.b16 %v763
        %v1513 = vunpack.c.l.b16 %v764
        %v1514 = vunpack.c.h.b16 %v764
        %v1515 = vunpack.c.l.b16 %v765
        %v1516 = vunpack.c.h.b16 %v765
        %v1517 = vunpack.c.l.b16 %v766
        %v1518 = vunpack.c.h.b16 %v766
        %v1519 = vunpack.c.l.b16 %v767
        %v1520 = vunpack.c.h.b16 %v767
        %v1521 = vunpack.c.l.b16 %v768
        %v1522 = vunpack.c.h.b16 %v768
        %v1523 = vunpack.c.l.b16 %v769
        %v1524 = vunpack.c.h.b16 %v769
        %v1525 = vunpack.c.l.b16 %v770
        %v1526 = vunpack.c.h.b16 %v770
        %v1527 = vunpack.c.l.b16 %v771
        %v1528 = vunpack.c.h.b16 %v771
        %v1529 = vunpack.c.l.b16 %v772
        %v1530 = vunpack.c.h.b16 %v772
        %v1531 = vunpack.c.l.b16 %v773
        %v1532 = vunpack.c.h.b16 %v773
        %v1533 = vunpack.c.l.b16 %v774
        %v1534 = vunpack.c.h.b16 %v774
        %v1535 = vunpack.c.l.b16 %v775
        %v1536 = vunpack.c.h.b16 %v775
        %v1537 = vunpack.c.l.b16 %v776
        %v1538 = vunpack.c.h.b16 %v776
        %v1539 = vunpack.c.l.b16 %v777
        %v1540 = vunpack.c.h.b16 %v777
        %v1541 = vunpack.c.l.b16 %v778
        %v1542 = vunpack.c.h.b16 %v778
        %v1543 = vunpack.c.l.b16 %v779
        %v1544 = vunpack.c.h.b16 %v779
        %v1545 = vunpack.c.l.b16 %v780
        %v1546 = vunpack.c.h.b16 %v780
        %v1547 = vunpack.c.l.b16 %v781
        %v1548 = vunpack.c.h.b16 %v781
        %v1549 = vunpack.c.l.b16 %v782
        %v1550 = vunpack.c.h.b16 %v782
        %v1551 = vunpack.c.l.b16 %v783
        %v1552 = vunpack.c.h.b16 %v783
        %v1553 = vunpack.c.l.b16 %v784
        %v1554 = vunpack.c.h.b16 %v784
        %v1555 = vunpack.c.l.b16 %v785
        %v1556 = vunpack.c.h.b16 %v785
        %v1557 = vunpack.c.l.b16 %v786
        %v1558 = vunpack.c.h.b16 %v786
        %v1559 = vunpack.c.l.b16 %v787
        %v1560 = vunpack.c.h.b16 %v787
        %v1561 = vunpack.c.l.b16 %v788
        %v1562 = vunpack.c.h.b16 %v788
        %v1563 = vunpack.c.l.b16 %v789
        %v1564 = vunpack.c.h.b16 %v789
        %v1565 = vunpack.c.l.b16 %v790
        %v1566 = vunpack.c.h.b16 %v790
        %v1567 = vunpack.c.l.b16 %v791
        %v1568 = vunpack.c.h.b16 %v791
        %v1569 = vunpack.c.l.b16 %v792
        %v1570 = vunpack.c.h.b16 %v792
        %v1571 = vunpack.c.l.b16 %v793
        %v1572 = vunpack.c.h.b16 %v793
        %v1573 = vunpack.c.l.b16 %v794
        %v1574 = vunpack.c.h.b16 %v794
        %v1575 = vunpack.c.l.b16 %v795
        %v1576 = vunpack.c.h.b16 %v795
        %v1577 = vunpack.c.l.b16 %v796
        %v1578 = vunpack.c.h.b16 %v796
        %v1579 = vunpack.c.l.b16 %v797
        %v1580 = vunpack.c.h.b16 %v797
        %v1581 = vunpack.c.l.b16 %v798
        %v1582 = vunpack.c.h.b16 %v798
        %v1583 = vunpack.c.l.b16 %v799
        %v1584 = vunpack.c.h.b16 %v799
        %v1585 = vunpack.c.l.b16 %v800
        %v1586 = vunpack.c.h.b16 %v800
        %v1587 = vunpack.c.l.b16 %v801
        %v1588 = vunpack.c.h.b16 %v801
        %v1589 = vunpack.c.l.b16 %v802
        %v1590 = vunpack.c.h.b16 %v802
        %v1591 = vunpack.c.l.b16 %v803
        %v1592 = vunpack.c.h.b16 %v803
        %v1593 = vunpack.c.l.b16 %v804
        %v1594 = vunpack.c.h.b16 %v804
        %v1595 = vunpack.c.l.b16 %v805
        %v1596 = vunpack.c.h.b16 %v805
        %v1597 = vunpack.c.l.b16 %v806
        %v1598 = vunpack.c.h.b16 %v806
        %v1599 = vunpack.c.l.b16 %v807
        %v1600 = vunpack.c.h.b16 %v807
        %v1601 = vunpack.c.l.b16 %v808
        %v1602 = vunpack.c.h.b16 %v808
        %v1603 = vunpack.c.l.b16 %v809
        %v1604 = vunpack.c.h.b16 %v809
        %v1605 = vunpack.c.l.b16 %v810
        %v1606 = vunpack.c.h.b16 %v810
        %v1607 = vunpack.c.l.b16 %v811
        %v1608 = vunpack.c.h.b16 %v811
        %v1609 = vunpack.c.l.b16 %v812
        %v1610 = vunpack.c.h.b16 %v812
        %v1611 = vunpack.c.l.b16 %v813
        %v1612 = vunpack.c.h.b16 %v813
        %v1613 = vunpack.c.l.b16 %v814
        %v1614 = vunpack.c.h.b16 %v814
        %v1615 = vunpack.c.l.b16 %v815
        %v1616 = vunpack.c.h.b16 %v815
        %v1617 = vunpack.c.l.b16 %v816
        %v1618 = vunpack.c.h.b16 %v816
        %v1619 = vunpack.c.l.b16 %v817
        %v1620 = vunpack.c.h.b16 %v817
        %v1621 = vunpack.c.l.b16 %v818
        %v1622 = vunpack.c.h.b16 %v818
        %v1623 = vunpack.c.l.b16 %v819
        %v1624 = vunpack.c.h.b16 %v819
        %v1625 = vunpack.c.l.b16 %v820
        %v1626 = vunpack.c.h.b16 %v820
        %v1627 = vunpack.c.l.b16 %v821
        %v1628 = vunpack.c.h.b16 %v821
        %v1629 = vunpack.c.l.b16 %v822
        %v1630 = vunpack.c.h.b16 %v822
        %v1631 = vunpack.c.l.b16 %v823
        %v1632 = vunpack.c.h.b16 %v823
        %v1633 = vunpack.c.l.b16 %v824
        %v1634 = vunpack.c.h.b16 %v824
        %v1635 = vunpack.c.l.b16 %v825
        %v1636 = vunpack.c.h.b16 %v825
        %v1637 = vunpack.c.l.b16 %v826
        %v1638 = vunpack.c.h.b16 %v826
        %v1639 = vunpack.c.l.b16 %v827
        %v1640 = vunpack.c.h.b16 %v827
        %v1641 = vunpack.c.l.b16 %v828
        %v1642 = vunpack.c.h.b16 %v828
        %v1643 = vunpack.c.l.b16 %v829
        %v1644 = vunpack.c.h.b16 %v829
        %v1645 = vunpack.c.l.b16 %v830
        %v1646 = vunpack.c.h.b16 %v830
        %v1647 = vunpack.c.l.b16 %v831
        %v1648 = vunpack.c.h.b16 %v831
        %v1649 = vunpack.c.l.b16 %v832
        %v1650 = vunpack.c.h.b16 %v832
        %v1651 = vunpack.c.l.b16 %v833
        %v1652 = vunpack.c.h.b16 %v833
        %v1653 = vunpack.c.l.b16 %v834
        %v1654 = vunpack.c.h.b16 %v834
        %v1655 = vunpack.c.l.b16 %v835
        %v1656 = vunpack.c.h.b16 %v835
        %v1657 = vunpack.c.l.b16 %v836
        %v1658 = vunpack.c.h.b16 %v836
        %v1659 = vunpack.c.l.b16 %v837
        %v1660 = vunpack.c.h.b16 %v837
        %v1661 = vunpack.c.l.b16 %v838
        %v1662 = vunpack.c.h.b16 %v838
        %v1663 = vpack.c.b16 %v1153, %v1151
        %v1664 = vpack.c.b16 %v1154, %v1152
        %v1665 = vpack.c.b16 %v1157, %v1155
        %v1666 = vpack.c.b16 %v1158, %v1156
        %v1667 = vpack.c.b16 %v1161, %v1159
        %v1668 = vpack.c.b16 %v1162, %v1160
        %v1669 = vpack.c.b16 %v1165, %v1163
        %v1670 = vpack.c.b16 %v1166, %v1164
        %v1671 = vpack.c.b16 %v1169, %v1167
        %v1672 = vpack.c.b16 %v1170, %v1168
        %v1673 = vpack.c.b16 %v1173, %v1171
        %v1674 = vpack.c.b16 %v1174, %v1172
        %v1675 = vpack.c.b16 %v1177, %v1175
        %v1676 = vpack.c.b16 %v1178, %v1176
        %v1677 = vpack.c.b16 %v1181, %v1179
        %v1678 = vpack.c.b16 %v1182, %v1180
        %v1679 = vpack.c.b16 %v1185, %v1183
        %v1680 = vpack.c.b16 %v1186, %v1184
        %v1681 = vpack.c.b16 %v1189, %v1187
        %v1682 = vpack.c.b16 %v1190, %v1188
        %v1683 = vpack.c.b16 %v1193, %v1191
        %v1684 = vpack.c.b16 %v1194, %v1192
        %v1685 = vpack.c.b16 %v1197, %v1195
        %v1686 = vpack.c.b16 %v1198, %v1196
        %v1687 = vpack.c.b16 %v1201, %v1199
        %v1688 = vpack.c.b16 %v1202, %v1200
        %v1689 = vpack.c.b16 %v1205, %v1203
        %v1690 = vpack.c.b16 %v1206, %v1204
        %v1691 = vpack.c.b16 %v1209, %v1207
        %v1692 = vpack.c.b16 %v1210, %v1208
        %v1693 = vpack.c.b16 %v1213, %v1211
        %v1694 = vpack.c.b16 %v1214, %v1212
        %v1695 = vpack.c.b16 %v1217, %v1215
        %v1696 = vpack.c.b16 %v1218, %v1216
        %v1697 = vpack.c.b16 %v1221, %v1219
        %v1698 = vpack.c.b16 %v1222, %v1220
        %v1699 = vpack.c.b16 %v1225, %v1223
        %v1700 = vpack.c.b16 %v1226, %v1224
        %v1701 = vpack.c.b16 %v1229, %v1227
        %v1702 = vpack.c.b16 %v1230, %v1228
        %v1703 = vpack.c.b16 %v1233, %v1231
        %v1704 = vpack.c.b16 %v1234, %v1232
        %v1705 = vpack.c.b16 %v1237, %v1235
        %v1706 = vpack.c.b16 %v1238, %v1236
        %v1707 = vpack.c.b16 %v1241, %v1239
        %v1708 = vpack.c.b16 %v1242, %v1240
        %v1709 = vpack.c.b16 %v1245, %v1243
        %v1710 = vpack.c.b16 %v1246, %v1244
        %v1711 = vpack.c.b16 %v1249, %v1247
        %v1712 = vpack.c.b16 %v1250, %v1248
        %v1713 = vpack.c.b16 %v1253, %v1251
        %v1714 = vpack.c.b16 %v1254, %v1252
        %v1715 = vpack.c.b16 %v1257, %v1255
        %v1716 = vpack.c.b16 %v1258, %v1256
        %v1717 = vpack.c.b16 %v1261, %v1259
        %v1718 = vpack.c.b16 %v1262, %v1260
        %v1719 = vpack.c.b16 %v1265, %v1263
        %v1720 = vpack.c.b16 %v1266, %v1264
        %v1721 = vpack.c.b16 %v1269, %v1267
        %v1722 = vpack.c.b16 %v1270, %v1268
        %v1723 = vpack.c.b16 %v1273, %v1271
        %v1724 = vpack.c.b16 %v1274, %v1272
        %v1725 = vpack.c.b16 %v1277, %v1275
        %v1726 = vpack.c.b16 %v1278, %v1276
        %v1727 = vpack.c.b16 %v1281, %v1279
        %v1728 = vpack.c.b16 %v1282, %v1280
        %v1729 = vpack.c.b16 %v1285, %v1283
        %v1730 = vpack.c.b16 %v1286, %v1284
        %v1731 = vpack.c.b16 %v1289, %v1287
        %v1732 = vpack.c.b16 %v1290, %v1288
        %v1733 = vpack.c.b16 %v1293, %v1291
        %v1734 = vpack.c.b16 %v1294, %v1292
        %v1735 = vpack.c.b16 %v1297, %v1295
        %v1736 = vpack.c.b16 %v1298, %v1296
        %v1737 = vpack.c.b16 %v1301, %v1299
        %v1738 = vpack.c.b16 %v1302, %v1300
        %v1739 = vpack.c.b16 %v1305, %v1303
        %v1740 = vpack.c.b16 %v1306, %v1304
        %v1741 = vpack.c.b16 %v1309, %v1307
        %v1742 = vpack.c.b16 %v1310, %v1308
        %v1743 = vpack.c.b16 %v1313, %v1311
        %v1744 = vpack.c.b16 %v1314, %v1312
        %v1745 = vpack.c.b16 %v1317, %v1315
        %v1746 = vpack.c.b16 %v1318, %v1316
        %v1747 = vpack.c.b16 %v1321, %v1319
        %v1748 = vpack.c.b16 %v1322, %v1320
        %v1749 = vpack.c.b16 %v1325, %v1323
        %v1750 = vpack.c.b16 %v1326, %v1324
        %v1751 = vpack.c.b16 %v1329, %v1327
        %v1752 = vpack.c.b16 %v1330, %v1328
        %v1753 = vpack.c.b16 %v1333, %v1331
        %v1754 = vpack.c.b16 %v1334, %v1332
        %v1755 = vpack.c.b16 %v1337, %v1335
        %v1756 = vpack.c.b16 %v1338, %v1336
        %v1757 = vpack.c.b16 %v1341, %v1339
        %v1758 = vpack.c.b16 %v1342, %v1340
        %v1759 = vpack.c.b16 %v1345, %v1343
        %v1760 = vpack.c.b16 %v1346, %v1344
        %v1761 = vpack.c.b16 %v1349, %v1347
        %v1762 = vpack.c.b16 %v1350, %v1348
        %v1763 = vpack.c.b16 %v1353, %v1351
        %v1764 = vpack.c.b16 %v1354, %v1352
        %v1765 = vpack.c.b16 %v1357, %v1355
        %v1766 = vpack.c.b16 %v1358, %v1356
        %v1767 = vpack.c.b16 %v1361, %v1359
        %v1768 = vpack.c.b16 %v1362, %v1360
        %v1769 = vpack.c.b16 %v1365, %v1363
        %v1770 = vpack.c.b16 %v1366, %v1364
        %v1771 = vpack.c.b16 %v1369, %v1367
        %v1772 = vpack.c.b16 %v1370, %v1368
        %v1773 = vpack.c.b16 %v1373, %v1371
        %v1774 = vpack.c.b16 %v1374, %v1372
        %v1775 = vpack.c.b16 %v1377, %v1375
        %v1776 = vpack.c.b16 %v1378, %v1376
        %v1777 = vpack.c.b16 %v1381, %v1379
        %v1778 = vpack.c.b16 %v1382, %v1380
        %v1779 = vpack.c.b16 %v1385, %v1383
        %v1780 = vpack.c.b16 %v1386, %v1384
        %v1781 = vpack.c.b16 %v1389, %v1387
        %v1782 = vpack.c.b16 %v1390, %v1388
        %v1783 = vpack.c.b16 %v1393, %v1391
        %v1784 = vpack.c.b16 %v1394, %v1392
        %v1785 = vpack.c.b16 %v1397, %v1395
        %v1786 = vpack.c.b16 %v1398, %v1396
        %v1787 = vpack.c.b16 %v1401, %v1399
        %v1788 = vpack.c.b16 %v1402, %v1400
        %v1789 = vpack.c.b16 %v1405, %v1403
        %v1790 = vpack.c.b16 %v1406, %v1404
        %v1791 = vpack.c.b16 %v1409, %v1407
        %v1792 = vpack.c.b16 %v1410, %v1408
        %v1793 = vpack.c.b16 %v1413, %v1411
        %v1794 = vpack.c.b16 %v1414, %v1412
        %v1795 = vpack.c.b16 %v1417, %v1415
        %v1796 = vpack.c.b16 %v1418, %v1416
        %v1797 = vpack.c.b16 %v1421, %v1419
        %v1798 = vpack.c.b16 %v1422, %v1420
        %v1799 = vpack.c.b16 %v1425, %v1423
        %v1800 = vpack.c.b16 %v1426, %v1424
        %v1801 = vpack.c.b16 %v1429, %v1427
        %v1802 = vpack.c.b16 %v1430, %v1428
        %v1803 = vpack.c.b16 %v1433, %v1431
        %v1804 = vpack.c.b16 %v1434, %v1432
        %v1805 = vpack.c.b16 %v1437, %v1435
        %v1806 = vpack.c.b16 %v1438, %v1436
        %v1807 = vpack.c.b16 %v1441, %v1439
        %v1808 = vpack.c.b16 %v1442, %v1440
        %v1809 = vpack.c.b16 %v1445, %v1443
        %v1810 = vpack.c.b16 %v1446, %v1444
        %v1811 = vpack.c.b16 %v1449, %v1447
        %v1812 = vpack.c.b16 %v1450, %v1448
        %v1813 = vpack.c.b16 %v1453, %v1451
        %v1814 = vpack.c.b16 %v1454, %v1452
        %v1815 = vpack.c.b16 %v1457, %v1455
        %v1816 = vpack.c.b16 %v1458, %v1456
        %v1817 = vpack.c.b16 %v1461, %v1459
        %v1818 = vpack.c.b16 %v1462, %v1460
        %v1819 = vpack.c.b16 %v1465, %v1463
        %v1820 = vpack.c.b16 %v1466, %v1464
        %v1821 = vpack.c.b16 %v1469, %v1467
        %v1822 = vpack.c.b16 %v1470, %v1468
        %v1823 = vpack.c.b16 %v1473, %v1471
        %v1824 = vpack.c.b16 %v1474, %v1472
        %v1825 = vpack.c.b16 %v1477, %v1475
        %v1826 = vpack.c.b16 %v1478, %v1476
        %v1827 = vpack.c.b16 %v1481, %v1479
        %v1828 = vpack.c.b16 %v1482, %v1480
        %v1829 = vpack.c.b16 %v1485, %v1483
        %v1830 = vpack.c.b16 %v1486, %v1484
        %v1831 = vpack.c.b16 %v1489, %v1487
        %v1832 = vpack.c.b16 %v1490, %v1488
        %v1833 = vpack.c.b16 %v1493, %v1491
        %v1834 = vpack.c.b16 %v1494, %v1492
        %v1835 = vpack.c.b16 %v1497, %v1495
        %v1836 = vpack.c.b16 %v1498, %v1496
        %v1837 = vpack.c.b16 %v1501, %v1499
        %v1838 = vpack.c.b16 %v1502, %v1500
        %v1839 = vpack.c.b16 %v1505, %v1503
        %v1840 = vpack.c.b16 %v1506, %v1504
        %v1841 = vpack.c.b16 %v1509, %v1507
        %v1842 = vpack.c.b16 %v1510, %v1508
        %v1843 = vpack.c.b16 %v1513, %v1511
        %v1844 = vpack.c.b16 %v1514, %v1512
        %v1845 = vpack.c.b16 %v1517, %v1515
        %v1846 = vpack.c.b16 %v1518, %v1516
        %v1847 = vpack.c.b16 %v1521, %v1519
        %v1848 = vpack.c.b16 %v1522, %v1520
        %v1849 = vpack.c.b16 %v1525, %v1523
        %v1850 = vpack.c.b16 %v1526, %v1524
        %v1851 = vpack.c.b16 %v1529, %v1527
        %v1852 = vpack.c.b16 %v1530, %v1528
        %v1853 = vpack.c.b16 %v1533, %v1531
        %v1854 = vpack.c.b16 %v1534, %v1532
        %v1855 = vpack.c.b16 %v1537, %v1535
        %v1856 = vpack.c.b16 %v1538, %v1536
        %v1857 = vpack.c.b16 %v1541, %v1539
        %v1858 = vpack.c.b16 %v1542, %v1540
        %v1859 = vpack.c.b16 %v1545, %v1543
        %v1860 = vpack.c.b16 %v1546, %v1544
        %v1861 = vpack.c.b16 %v1549, %v1547
        %v1862 = vpack.c.b16 %v1550, %v1548
        %v1863 = vpack.c.b16 %v1553, %v1551
        %v1864 = vpack.c.b16 %v1554, %v1552
        %v1865 = vpack.c.b16 %v1557, %v1555
        %v1866 = vpack.c.b16 %v1558, %v1556
        %v1867 = vpack.c.b16 %v1561, %v1559
        %v1868 = vpack.c.b16 %v1562, %v1560
        %v1869 = vpack.c.b16 %v1565, %v1563
        %v1870 = vpack.c.b16 %v1566, %v1564
        %v1871 = vpack.c.b16 %v1569, %v1567
        %v1872 = vpack.c.b16 %v1570, %v1568
        %v1873 = vpack.c.b16 %v1573, %v1571
        %v1874 = vpack.c.b16 %v1574, %v1572
        %v1875 = vpack.c.b16 %v1577, %v1575
        %v1876 = vpack.c.b16 %v1578, %v1576
        %v1877 = vpack.c.b16 %v1581, %v1579
        %v1878 = vpack.c.b16 %v1582, %v1580
        %v1879 = vpack.c.b16 %v1585, %v1583
        %v1880 = vpack.c.b16 %v1586, %v1584
        %v1881 = vpack.c.b16 %v1589, %v1587
        %v1882 = vpack.c.b16 %v1590, %v1588
        %v1883 = vpack.c.b16 %v1593, %v1591
        %v1884 = vpack.c.b16 %v1594, %v1592
        %v1885 = vpack.c.b16 %v1597, %v1595
        %v1886 = vpack.c.b16 %v1598, %v1596
        %v1887 = vpack.c.b16 %v1601, %v1599
        %v1888 = vpack.c.b16 %v1602, %v1600
        %v1889 = vpack.c.b16 %v1605, %v1603
        %v1890 = vpack.c.b16 %v1606, %v1604
        %v1891 = vpack.c.b16 %v1609, %v1607
        %v1892 = vpack.c.b16 %v1610, %v1608
        %v1893 = vpack.c.b16 %v1613, %v1611
        %v1894 = vpack.c.b16 %v1614, %v1612
        %v1895 = vpack.c.b16 %v1617, %v1615
        %v1896 = vpack.c.b16 %v1618, %v1616
        %v1897 = vpack.c.b16 %v1621, %v1619
        %v1898 = vpack.c.b16 %v1622, %v1620
        %v1899 = vpack.c.b16 %v1625, %v1623
        %v1900 = vpack.c.b16 %v1626, %v1624
        %v1901 = vpack.c.b16 %v1629, %v1627
        %v1902 = vpack.c.b16 %v1630, %v1628
        %v1903 = vpack.c.b16 %v1633, %v1631
        %v1904 = vpack.c.b16 %v1634, %v1632
        %v1905 = vpack.c.b16 %v1637, %v1635
        %v1906 = vpack.c.b16 %v1638, %v1636
        %v1907 = vpack.c.b16 %v1641, %v1639
        %v1908 = vpack.c.b16 %v1642, %v1640
        %v1909 = vpack.c.b16 %v1645, %v1643
        %v1910 = vpack.c.b16 %v1646, %v1644
        %v1911 = vpack.c.b16 %v1649, %v1647
        %v1912 = vpack.c.b16 %v1650, %v1648
        %v1913 = vpack.c.b16 %v1653, %v1651
        %v1914 = vpack.c.b16 %v1654, %v1652
        %v1915 = vpack.c.b16 %v1657, %v1655
        %v1916 = vpack.c.b16 %v1658, %v1656
        %v1917 = vpack.c.b16 %v1661, %v1659
        %v1918 = vpack.c.b16 %v1662, %v1660
        %2175 = vmatprep.subr.bf16.mxu0 %v1664
        %2176 = vmatpush1.bf16.msra.mxu0 %v1663
        %2177 = vmatprep.subr.bf16.mxu0 %v1666
        %2178 = vmatpush1.bf16.msra.mxu0 %v1665
        %2179 = vmatprep.subr.bf16.mxu0 %v1668
        %2180 = vmatpush1.bf16.msra.mxu0 %v1667
        %2181 = vmatprep.subr.bf16.mxu0 %v1670
        %2182 = vmatpush1.bf16.msra.mxu0 %v1669
        %2183 = vmatprep.subr.bf16.mxu0 %v1672
        %2184 = vmatpush1.bf16.msra.mxu0 %v1671
        %2185 = vmatprep.subr.bf16.mxu0 %v1674
        %2186 = vmatpush1.bf16.msra.mxu0 %v1673
        %2187 = vmatprep.subr.bf16.mxu0 %v1676
        %2188 = vmatpush1.bf16.msra.mxu0 %v1675
        %2189 = vmatprep.subr.bf16.mxu0 %v1678
        %2190 = vmatpush1.bf16.msra.mxu0 %v1677
        %2191 = vmatprep.subr.bf16.mxu0 %v1680
        %2192 = vmatpush1.bf16.msra.mxu0 %v1679
        %2193 = vmatprep.subr.bf16.mxu0 %v1682
        %2194 = vmatpush1.bf16.msra.mxu0 %v1681
        %2195 = vmatprep.subr.bf16.mxu0 %v1684
        %2196 = vmatpush1.bf16.msra.mxu0 %v1683
        %2197 = vmatprep.subr.bf16.mxu0 %v1686
        %2198 = vmatpush1.bf16.msra.mxu0 %v1685
        %2199 = vmatprep.subr.bf16.mxu0 %v1688
        %2200 = vmatpush1.bf16.msra.mxu0 %v1687
        %2201 = vmatprep.subr.bf16.mxu0 %v1690
        %2202 = vmatpush1.bf16.msra.mxu0 %v1689
        %2203 = vmatprep.subr.bf16.mxu0 %v1692
        %2204 = vmatpush1.bf16.msra.mxu0 %v1691
        %2205 = vmatprep.subr.bf16.mxu0 %v1694
        %2206 = vmatpush1.bf16.msra.mxu0 %v1693
        %2207 = vmatprep.mubr.bf16.mxu0 %v864
        %2208 = vmatmul.mubr.bf16.gmra.mrb[0].mxu0 %v863
        %v2209 = vpop.f32.mrb[0].mxu0
        %v2210 = vadd.f32 0.0, %v2209
        %v2211 = vpop.f32.mrb[0].mxu0
        %v2212 = vadd.f32 0.0, %v2211
        %v2213 = vpop.f32.mrb[0].mxu0
        %v2214 = vpop.f32.mrb[0].mxu0
        %2215 = vdwg.mxu0
        %2216 = vmatprep.subr.bf16.mxu0 %v1696
        %2217 = vmatpush1.bf16.msra.mxu0 %v1695
        %2218 = vmatprep.subr.bf16.mxu0 %v1698
        %2219 = vmatpush1.bf16.msra.mxu0 %v1697
        %2220 = vmatprep.subr.bf16.mxu0 %v1700
        %2221 = vmatpush1.bf16.msra.mxu0 %v1699
        %2222 = vmatprep.subr.bf16.mxu0 %v1702
        %2223 = vmatpush1.bf16.msra.mxu0 %v1701
        %2224 = vmatprep.subr.bf16.mxu0 %v1704
        %2225 = vmatpush1.bf16.msra.mxu0 %v1703
        %2226 = vmatprep.subr.bf16.mxu0 %v1706
        %2227 = vmatpush1.bf16.msra.mxu0 %v1705
        %2228 = vmatprep.subr.bf16.mxu0 %v1708
        %2229 = vmatpush1.bf16.msra.mxu0 %v1707
        %2230 = vmatprep.subr.bf16.mxu0 %v1710
        %2231 = vmatpush1.bf16.msra.mxu0 %v1709
        %2232 = vmatprep.subr.bf16.mxu0 %v1712
        %2233 = vmatpush1.bf16.msra.mxu0 %v1711
        %2234 = vmatprep.subr.bf16.mxu0 %v1714
        %2235 = vmatpush1.bf16.msra.mxu0 %v1713
        %2236 = vmatprep.subr.bf16.mxu0 %v1716
        %2237 = vmatpush1.bf16.msra.mxu0 %v1715
        %2238 = vmatprep.subr.bf16.mxu0 %v1718
        %2239 = vmatpush1.bf16.msra.mxu0 %v1717
        %2240 = vmatprep.subr.bf16.mxu0 %v1720
        %2241 = vmatpush1.bf16.msra.mxu0 %v1719
        %2242 = vmatprep.subr.bf16.mxu0 %v1722
        %2243 = vmatpush1.bf16.msra.mxu0 %v1721
        %2244 = vmatprep.subr.bf16.mxu0 %v1724
        %2245 = vmatpush1.bf16.msra.mxu0 %v1723
        %2246 = vmatprep.subr.bf16.mxu0 %v1726
        %2247 = vmatpush1.bf16.msra.mxu0 %v1725
        %2248 = vmatprep.mubr.bf16.mxu0 %v866
        %2249 = vmatmul.mubr.bf16.gmra.mrb[0].mxu0 %v865
        %v2250 = vpop.f32.mrb[0].mxu0
        %v2251 = vadd.f32 %v2210, %v2250
        %v2252 = vpop.f32.mrb[0].mxu0
        %v2253 = vadd.f32 %v2212, %v2252
        %v2254 = vpop.f32.mrb[0].mxu0
        %v2255 = vpop.f32.mrb[0].mxu0
        %2256 = vdwg.mxu0
        %2257 = vmatprep.subr.bf16.mxu0 %v1728
        %2258 = vmatpush1.bf16.msra.mxu0 %v1727
        %2259 = vmatprep.subr.bf16.mxu0 %v1730
        %2260 = vmatpush1.bf16.msra.mxu0 %v1729
        %2261 = vmatprep.subr.bf16.mxu0 %v1732
        %2262 = vmatpush1.bf16.msra.mxu0 %v1731
        %2263 = vmatprep.subr.bf16.mxu0 %v1734
        %2264 = vmatpush1.bf16.msra.mxu0 %v1733
        %2265 = vmatprep.subr.bf16.mxu0 %v1736
        %2266 = vmatpush1.bf16.msra.mxu0 %v1735
        %2267 = vmatprep.subr.bf16.mxu0 %v1738
        %2268 = vmatpush1.bf16.msra.mxu0 %v1737
        %2269 = vmatprep.subr.bf16.mxu0 %v1740
        %2270 = vmatpush1.bf16.msra.mxu0 %v1739
        %2271 = vmatprep.subr.bf16.mxu0 %v1742
        %2272 = vmatpush1.bf16.msra.mxu0 %v1741
        %2273 = vmatprep.subr.bf16.mxu0 %v1744
        %2274 = vmatpush1.bf16.msra.mxu0 %v1743
        %2275 = vmatprep.subr.bf16.mxu0 %v1746
        %2276 = vmatpush1.bf16.msra.mxu0 %v1745
        %2277 = vmatprep.subr.bf16.mxu0 %v1748
        %2278 = vmatpush1.bf16.msra.mxu0 %v1747
        %2279 = vmatprep.subr.bf16.mxu0 %v1750
        %2280 = vmatpush1.bf16.msra.mxu0 %v1749
        %2281 = vmatprep.subr.bf16.mxu0 %v1752
        %2282 = vmatpush1.bf16.msra.mxu0 %v1751
        %2283 = vmatprep.subr.bf16.mxu0 %v1754
        %2284 = vmatpush1.bf16.msra.mxu0 %v1753
        %2285 = vmatprep.subr.bf16.mxu0 %v1756
        %2286 = vmatpush1.bf16.msra.mxu0 %v1755
        %2287 = vmatprep.subr.bf16.mxu0 %v1758
        %2288 = vmatpush1.bf16.msra.mxu0 %v1757
        %2289 = vmatprep.mubr.bf16.mxu0 %v868
        %2290 = vmatmul.mubr.bf16.gmra.mrb[0].mxu0 %v867
        %v2291 = vpop.f32.mrb[0].mxu0
        %v2292 = vadd.f32 %v2251, %v2291
        %v2293 = vpop.f32.mrb[0].mxu0
        %v2294 = vadd.f32 %v2253, %v2293
        %v2295 = vpop.f32.mrb[0].mxu0
        %v2296 = vpop.f32.mrb[0].mxu0
        %2297 = vdwg.mxu0
        %2298 = vmatprep.subr.bf16.mxu0 %v1760
        %2299 = vmatpush1.bf16.msra.mxu0 %v1759
        %2300 = vmatprep.subr.bf16.mxu0 %v1762
        %2301 = vmatpush1.bf16.msra.mxu0 %v1761
        %2302 = vmatprep.subr.bf16.mxu0 %v1764
        %2303 = vmatpush1.bf16.msra.mxu0 %v1763
        %2304 = vmatprep.subr.bf16.mxu0 %v1766
        %2305 = vmatpush1.bf16.msra.mxu0 %v1765
        %2306 = vmatprep.subr.bf16.mxu0 %v1768
        %2307 = vmatpush1.bf16.msra.mxu0 %v1767
        %2308 = vmatprep.subr.bf16.mxu0 %v1770
        %2309 = vmatpush1.bf16.msra.mxu0 %v1769
        %2310 = vmatprep.subr.bf16.mxu0 %v1772
        %2311 = vmatpush1.bf16.msra.mxu0 %v1771
        %2312 = vmatprep.subr.bf16.mxu0 %v1774
        %2313 = vmatpush1.bf16.msra.mxu0 %v1773
        %2314 = vmatprep.subr.bf16.mxu0 %v1776
        %2315 = vmatpush1.bf16.msra.mxu0 %v1775
        %2316 = vmatprep.subr.bf16.mxu0 %v1778
        %2317 = vmatpush1.bf16.msra.mxu0 %v1777
        %2318 = vmatprep.subr.bf16.mxu0 %v1780
        %2319 = vmatpush1.bf16.msra.mxu0 %v1779
        %2320 = vmatprep.subr.bf16.mxu0 %v1782
        %2321 = vmatpush1.bf16.msra.mxu0 %v1781
        %2322 = vmatprep.subr.bf16.mxu0 %v1784
        %2323 = vmatpush1.bf16.msra.mxu0 %v1783
        %2324 = vmatprep.subr.bf16.mxu0 %v1786
        %2325 = vmatpush1.bf16.msra.mxu0 %v1785
        %2326 = vmatprep.subr.bf16.mxu0 %v1788
        %2327 = vmatpush1.bf16.msra.mxu0 %v1787
        %2328 = vmatprep.subr.bf16.mxu0 %v1790
        %2329 = vmatpush1.bf16.msra.mxu0 %v1789
        %2330 = vmatprep.mubr.bf16.mxu0 %v870
        %2331 = vmatmul.mubr.bf16.gmra.mrb[0].mxu0 %v869
        %v2332 = vpop.f32.mrb[0].mxu0
        %v2333 = vadd.f32 %v2292, %v2332
        %v2334 = vpop.f32.mrb[0].mxu0
        %v2335 = vadd.f32 %v2294, %v2334
        %v2336 = vpop.f32.mrb[0].mxu0
        %v2337 = vpop.f32.mrb[0].mxu0
        %2338 = vdwg.mxu0
        %2339 = vmatprep.subr.bf16.mxu0 %v1792
        %2340 = vmatpush1.bf16.msra.mxu0 %v1791
        %2341 = vmatprep.subr.bf16.mxu0 %v1794
        %2342 = vmatpush1.bf16.msra.mxu0 %v1793
        %2343 = vmatprep.subr.bf16.mxu0 %v1796
        %2344 = vmatpush1.bf16.msra.mxu0 %v1795
        %2345 = vmatprep.subr.bf16.mxu0 %v1798
        %2346 = vmatpush1.bf16.msra.mxu0 %v1797
        %2347 = vmatprep.subr.bf16.mxu0 %v1800
        %2348 = vmatpush1.bf16.msra.mxu0 %v1799
        %2349 = vmatprep.subr.bf16.mxu0 %v1802
        %2350 = vmatpush1.bf16.msra.mxu0 %v1801
        %2351 = vmatprep.subr.bf16.mxu0 %v1804
        %2352 = vmatpush1.bf16.msra.mxu0 %v1803
        %2353 = vmatprep.subr.bf16.mxu0 %v1806
        %2354 = vmatpush1.bf16.msra.mxu0 %v1805
        %2355 = vmatprep.subr.bf16.mxu0 %v1808
        %2356 = vmatpush1.bf16.msra.mxu0 %v1807
        %2357 = vmatprep.subr.bf16.mxu0 %v1810
        %2358 = vmatpush1.bf16.msra.mxu0 %v1809
        %2359 = vmatprep.subr.bf16.mxu0 %v1812
        %2360 = vmatpush1.bf16.msra.mxu0 %v1811
        %2361 = vmatprep.subr.bf16.mxu0 %v1814
        %2362 = vmatpush1.bf16.msra.mxu0 %v1813
        %2363 = vmatprep.subr.bf16.mxu0 %v1816
        %2364 = vmatpush1.bf16.msra.mxu0 %v1815
        %2365 = vmatprep.subr.bf16.mxu0 %v1818
        %2366 = vmatpush1.bf16.msra.mxu0 %v1817
        %2367 = vmatprep.subr.bf16.mxu0 %v1820
        %2368 = vmatpush1.bf16.msra.mxu0 %v1819
        %2369 = vmatprep.subr.bf16.mxu0 %v1822
        %2370 = vmatpush1.bf16.msra.mxu0 %v1821
        %2371 = vmatprep.mubr.bf16.mxu0 %v872
        %2372 = vmatmul.mubr.bf16.gmra.mrb[0].mxu0 %v871
        %v2373 = vpop.f32.mrb[0].mxu0
        %v2374 = vadd.f32 %v2333, %v2373
        %v2375 = vpop.f32.mrb[0].mxu0
        %v2376 = vadd.f32 %v2335, %v2375
        %v2377 = vpop.f32.mrb[0].mxu0
        %v2378 = vpop.f32.mrb[0].mxu0
        %2379 = vdwg.mxu0
        %2380 = vmatprep.subr.bf16.mxu0 %v1824
        %2381 = vmatpush1.bf16.msra.mxu0 %v1823
        %2382 = vmatprep.subr.bf16.mxu0 %v1826
        %2383 = vmatpush1.bf16.msra.mxu0 %v1825
        %2384 = vmatprep.subr.bf16.mxu0 %v1828
        %2385 = vmatpush1.bf16.msra.mxu0 %v1827
        %2386 = vmatprep.subr.bf16.mxu0 %v1830
        %2387 = vmatpush1.bf16.msra.mxu0 %v1829
        %2388 = vmatprep.subr.bf16.mxu0 %v1832
        %2389 = vmatpush1.bf16.msra.mxu0 %v1831
        %2390 = vmatprep.subr.bf16.mxu0 %v1834
        %2391 = vmatpush1.bf16.msra.mxu0 %v1833
        %2392 = vmatprep.subr.bf16.mxu0 %v1836
        %2393 = vmatpush1.bf16.msra.mxu0 %v1835
        %2394 = vmatprep.subr.bf16.mxu0 %v1838
        %2395 = vmatpush1.bf16.msra.mxu0 %v1837
        %2396 = vmatprep.subr.bf16.mxu0 %v1840
        %2397 = vmatpush1.bf16.msra.mxu0 %v1839
        %2398 = vmatprep.subr.bf16.mxu0 %v1842
        %2399 = vmatpush1.bf16.msra.mxu0 %v1841
        %2400 = vmatprep.subr.bf16.mxu0 %v1844
        %2401 = vmatpush1.bf16.msra.mxu0 %v1843
        %2402 = vmatprep.subr.bf16.mxu0 %v1846
        %2403 = vmatpush1.bf16.msra.mxu0 %v1845
        %2404 = vmatprep.subr.bf16.mxu0 %v1848
        %2405 = vmatpush1.bf16.msra.mxu0 %v1847
        %2406 = vmatprep.subr.bf16.mxu0 %v1850
        %2407 = vmatpush1.bf16.msra.mxu0 %v1849
        %2408 = vmatprep.subr.bf16.mxu0 %v1852
        %2409 = vmatpush1.bf16.msra.mxu0 %v1851
        %2410 = vmatprep.subr.bf16.mxu0 %v1854
        %2411 = vmatpush1.bf16.msra.mxu0 %v1853
        %2412 = vmatprep.mubr.bf16.mxu0 %v874
        %2413 = vmatmul.mubr.bf16.gmra.mrb[0].mxu0 %v873
        %v2414 = vpop.f32.mrb[0].mxu0
        %v2415 = vadd.f32 %v2374, %v2414
        %v2416 = vpop.f32.mrb[0].mxu0
        %v2417 = vadd.f32 %v2376, %v2416
        %v2418 = vpop.f32.mrb[0].mxu0
        %v2419 = vpop.f32.mrb[0].mxu0
        %2420 = vdwg.mxu0
        %2421 = vmatprep.subr.bf16.mxu0 %v1856
        %2422 = vmatpush1.bf16.msra.mxu0 %v1855
        %2423 = vmatprep.subr.bf16.mxu0 %v1858
        %2424 = vmatpush1.bf16.msra.mxu0 %v1857
        %2425 = vmatprep.subr.bf16.mxu0 %v1860
        %2426 = vmatpush1.bf16.msra.mxu0 %v1859
        %2427 = vmatprep.subr.bf16.mxu0 %v1862
        %2428 = vmatpush1.bf16.msra.mxu0 %v1861
        %2429 = vmatprep.subr.bf16.mxu0 %v1864
        %2430 = vmatpush1.bf16.msra.mxu0 %v1863
        %2431 = vmatprep.subr.bf16.mxu0 %v1866
        %2432 = vmatpush1.bf16.msra.mxu0 %v1865
        %2433 = vmatprep.subr.bf16.mxu0 %v1868
        %2434 = vmatpush1.bf16.msra.mxu0 %v1867
        %2435 = vmatprep.subr.bf16.mxu0 %v1870
        %2436 = vmatpush1.bf16.msra.mxu0 %v1869
        %2437 = vmatprep.subr.bf16.mxu0 %v1872
        %2438 = vmatpush1.bf16.msra.mxu0 %v1871
        %2439 = vmatprep.subr.bf16.mxu0 %v1874
        %2440 = vmatpush1.bf16.msra.mxu0 %v1873
        %2441 = vmatprep.subr.bf16.mxu0 %v1876
        %2442 = vmatpush1.bf16.msra.mxu0 %v1875
        %2443 = vmatprep.subr.bf16.mxu0 %v1878
        %2444 = vmatpush1.bf16.msra.mxu0 %v1877
        %2445 = vmatprep.subr.bf16.mxu0 %v1880
        %2446 = vmatpush1.bf16.msra.mxu0 %v1879
        %2447 = vmatprep.subr.bf16.mxu0 %v1882
        %2448 = vmatpush1.bf16.msra.mxu0 %v1881
        %2449 = vmatprep.subr.bf16.mxu0 %v1884
        %2450 = vmatpush1.bf16.msra.mxu0 %v1883
        %2451 = vmatprep.subr.bf16.mxu0 %v1886
        %2452 = vmatpush1.bf16.msra.mxu0 %v1885
        %2453 = vmatprep.mubr.bf16.mxu0 %v876
        %2454 = vmatmul.mubr.bf16.gmra.mrb[0].mxu0 %v875
        %v2455 = vpop.f32.mrb[0].mxu0
        %v2456 = vadd.f32 %v2415, %v2455
        %v2457 = vpop.f32.mrb[0].mxu0
        %v2458 = vadd.f32 %v2417, %v2457
        %v2459 = vpop.f32.mrb[0].mxu0
        %v2460 = vpop.f32.mrb[0].mxu0
        %2461 = vdwg.mxu0
        %2462 = vmatprep.subr.bf16.mxu0 %v1888
        %2463 = vmatpush1.bf16.msra.mxu0 %v1887
        %2464 = vmatprep.subr.bf16.mxu0 %v1890
        %2465 = vmatpush1.bf16.msra.mxu0 %v1889
        %2466 = vmatprep.subr.bf16.mxu0 %v1892
        %2467 = vmatpush1.bf16.msra.mxu0 %v1891
        %2468 = vmatprep.subr.bf16.mxu0 %v1894
        %2469 = vmatpush1.bf16.msra.mxu0 %v1893
        %2470 = vmatprep.subr.bf16.mxu0 %v1896
        %2471 = vmatpush1.bf16.msra.mxu0 %v1895
        %2472 = vmatprep.subr.bf16.mxu0 %v1898
        %2473 = vmatpush1.bf16.msra.mxu0 %v1897
        %2474 = vmatprep.subr.bf16.mxu0 %v1900
        %2475 = vmatpush1.bf16.msra.mxu0 %v1899
        %2476 = vmatprep.subr.bf16.mxu0 %v1902
        %2477 = vmatpush1.bf16.msra.mxu0 %v1901
        %2478 = vmatprep.subr.bf16.mxu0 %v1904
        %2479 = vmatpush1.bf16.msra.mxu0 %v1903
        %2480 = vmatprep.subr.bf16.mxu0 %v1906
        %2481 = vmatpush1.bf16.msra.mxu0 %v1905
        %2482 = vmatprep.subr.bf16.mxu0 %v1908
        %2483 = vmatpush1.bf16.msra.mxu0 %v1907
        %2484 = vmatprep.subr.bf16.mxu0 %v1910
        %2485 = vmatpush1.bf16.msra.mxu0 %v1909
        %2486 = vmatprep.subr.bf16.mxu0 %v1912
        %2487 = vmatpush1.bf16.msra.mxu0 %v1911
        %2488 = vmatprep.subr.bf16.mxu0 %v1914
        %2489 = vmatpush1.bf16.msra.mxu0 %v1913
        %2490 = vmatprep.subr.bf16.mxu0 %v1916
        %2491 = vmatpush1.bf16.msra.mxu0 %v1915
        %2492 = vmatprep.subr.bf16.mxu0 %v1918
        %2493 = vmatpush1.bf16.msra.mxu0 %v1917
        %2494 = vmatprep.mubr.bf16.mxu0 %v878
        %2495 = vmatmul.mubr.bf16.gmra.mrb[0].mxu0 %v877
        %v2496 = vpop.f32.mrb[0].mxu0
        %v2497 = vadd.f32 %v2456, %v2496
        %v2498 = vpop.f32.mrb[0].mxu0
        %v2499 = vadd.f32 %v2458, %v2498
        %v2500 = vpop.f32.mrb[0].mxu0
        %v2501 = vpop.f32.mrb[0].mxu0
        %2502 = vdwg.mxu0
        %v2503 = vadd.f32 %v581, %v2497
        %v2504 = vadd.f32 %v582, %v2499
        %2505 = vst [vmem:[#allocation2] sm:$0xff] %v2503
        %2506 = vst [vmem:[#allocation2 + $0x8] sm:$0xff] %v2504
        %p2507 = scmp.eq.s32.totalorder %s34, 1
        // Predicated region
        $region113: #{tpu_custom_call.1} parent=63 // pred_check
          %p2508 = pneg %p2507
        $region114: #{tpu_custom_call.1} parent=63 // pred_check_branch
          %2510 = sbr.rel (%p2508) target = $region116
        $region115: #{tpu_custom_call.1} parent=63 // pred_region
          %v2511 = vld [vmem:[#allocation2] sm:$0xff]
          %v2512 = vld [vmem:[#allocation2 + $0x8] sm:$0xff]
          %v2513 = vld [vmem:[#allocation9] sm:$0xff]
          %v2514 = vld [vmem:[#allocation9 + $0x8] sm:$0xff]
          %v2515 = vld [vmem:[#allocation9 + $0x10] sm:$0xff]
          %v2516 = vld [vmem:[#allocation9 + $0x18] sm:$0xff]
          %v2517 = vld [vmem:[#allocation9 + $0x20] sm:$0xff]
          %v2518 = vld [vmem:[#allocation9 + $0x28] sm:$0xff]
          %v2519 = vld [vmem:[#allocation9 + $0x30] sm:$0xff]
          %v2520 = vld [vmem:[#allocation9 + $0x38] sm:$0xff]
          %v2521 = vld [vmem:[#allocation9 + $0x40] sm:$0xff]
          %v2522 = vld [vmem:[#allocation9 + $0x48] sm:$0xff]
          %v2523 = vld [vmem:[#allocation9 + $0x50] sm:$0xff]
          %v2524 = vld [vmem:[#allocation9 + $0x58] sm:$0xff]
          %v2525 = vld [vmem:[#allocation9 + $0x60] sm:$0xff]
          %v2526 = vld [vmem:[#allocation9 + $0x68] sm:$0xff]
          %v2527 = vld [vmem:[#allocation9 + $0x70] sm:$0xff]
          %v2528 = vld [vmem:[#allocation9 + $0x78] sm:$0xff]
          %v2529 = vld [vmem:[#allocation9 + $0x80] sm:$0xff]
          %v2530 = vld [vmem:[#allocation9 + $0x88] sm:$0xff]
          %v2531 = vld [vmem:[#allocation9 + $0x90] sm:$0xff]
          %v2532 = vld [vmem:[#allocation9 + $0x98] sm:$0xff]
          %v2533 = vld [vmem:[#allocation9 + $0xa0] sm:$0xff]
          %v2534 = vld [vmem:[#allocation9 + $0xa8] sm:$0xff]
          %v2535 = vld [vmem:[#allocation9 + $0xb0] sm:$0xff]
          %v2536 = vld [vmem:[#allocation9 + $0xb8] sm:$0xff]
          %v2537 = vld [vmem:[#allocation9 + $0xc0] sm:$0xff]
          %v2538 = vld [vmem:[#allocation9 + $0xc8] sm:$0xff]
          %v2539 = vld [vmem:[#allocation9 + $0xd0] sm:$0xff]
          %v2540 = vld [vmem:[#allocation9 + $0xd8] sm:$0xff]
          %v2541 = vld [vmem:[#allocation9 + $0xe0] sm:$0xff]
          %v2542 = vld [vmem:[#allocation9 + $0xe8] sm:$0xff]
          %v2543 = vld [vmem:[#allocation9 + $0xf0] sm:$0xff]
          %v2544 = vld [vmem:[#allocation9 + $0xf8] sm:$0xff]
          %v2545 = vld [vmem:[#allocation9 + $0x100] sm:$0xff]
          %v2546 = vld [vmem:[#allocation9 + $0x108] sm:$0xff]
          %v2547 = vld [vmem:[#allocation9 + $0x110] sm:$0xff]
          %v2548 = vld [vmem:[#allocation9 + $0x118] sm:$0xff]
          %v2549 = vld [vmem:[#allocation9 + $0x120] sm:$0xff]
          %v2550 = vld [vmem:[#allocation9 + $0x128] sm:$0xff]
          %v2551 = vld [vmem:[#allocation9 + $0x130] sm:$0xff]
          %v2552 = vld [vmem:[#allocation9 + $0x138] sm:$0xff]
          %v2553 = vld [vmem:[#allocation9 + $0x140] sm:$0xff]
          %v2554 = vld [vmem:[#allocation9 + $0x148] sm:$0xff]
          %v2555 = vld [vmem:[#allocation9 + $0x150] sm:$0xff]
          %v2556 = vld [vmem:[#allocation9 + $0x158] sm:$0xff]
          %v2557 = vld [vmem:[#allocation9 + $0x160] sm:$0xff]
          %v2558 = vld [vmem:[#allocation9 + $0x168] sm:$0xff]
          %v2559 = vld [vmem:[#allocation9 + $0x170] sm:$0xff]
          %v2560 = vld [vmem:[#allocation9 + $0x178] sm:$0xff]
          %v2561 = vld [vmem:[#allocation9 + $0x180] sm:$0xff]
          %v2562 = vld [vmem:[#allocation9 + $0x188] sm:$0xff]
          %v2563 = vld [vmem:[#allocation9 + $0x190] sm:$0xff]
          %v2564 = vld [vmem:[#allocation9 + $0x198] sm:$0xff]
          %v2565 = vld [vmem:[#allocation9 + $0x1a0] sm:$0xff]
          %v2566 = vld [vmem:[#allocation9 + $0x1a8] sm:$0xff]
          %v2567 = vld [vmem:[#allocation9 + $0x1b0] sm:$0xff]
          %v2568 = vld [vmem:[#allocation9 + $0x1b8] sm:$0xff]
          %v2569 = vld [vmem:[#allocation9 + $0x1c0] sm:$0xff]
          %v2570 = vld [vmem:[#allocation9 + $0x1c8] sm:$0xff]
          %v2571 = vld [vmem:[#allocation9 + $0x1d0] sm:$0xff]
          %v2572 = vld [vmem:[#allocation9 + $0x1d8] sm:$0xff]
          %v2573 = vld [vmem:[#allocation9 + $0x1e0] sm:$0xff]
          %v2574 = vld [vmem:[#allocation9 + $0x1e8] sm:$0xff]
          %v2575 = vld [vmem:[#allocation9 + $0x1f0] sm:$0xff]
          %v2576 = vld [vmem:[#allocation9 + $0x1f8] sm:$0xff]
          %v2577 = vld [vmem:[#allocation11] sm:$0x3]
          %v2579 = vlaneseq
          %v2580 = vshrl.u32 %v2579, 7
          %v2581 = vsub.s32 0, %v2580
          %v2582 = vrot.slane %v2577, %v2581
          %v2583 = vlaneseq
          %v2584 = vshrl.u32 %v2583, 7
          %v2585 = vsub.s32 1, %v2584
          %v2586 = vrot.slane %v2577, %v2585
          %2589 = vmatprep.subr.mxu0 %v2514
          %2590 = vmatpush1.msra.mxu0 %v2513
          %2591 = vmatprep.subr.mxu0 %v2516
          %2592 = vmatpush1.msra.mxu0 %v2515
          %2593 = vmatprep.subr.mxu0 %v2518
          %2594 = vmatpush1.msra.mxu0 %v2517
          %2595 = vmatprep.subr.mxu0 %v2520
          %2596 = vmatpush1.msra.mxu0 %v2519
          %2597 = vmatprep.subr.mxu0 %v2522
          %2598 = vmatpush1.msra.mxu0 %v2521
          %2599 = vmatprep.subr.mxu0 %v2524
          %2600 = vmatpush1.msra.mxu0 %v2523
          %2601 = vmatprep.subr.mxu0 %v2526
          %2602 = vmatpush1.msra.mxu0 %v2525
          %2603 = vmatprep.subr.mxu0 %v2528
          %2604 = vmatpush1.msra.mxu0 %v2527
          %2605 = vmatprep.subr.mxu0 %v2530
          %2606 = vmatpush1.msra.mxu0 %v2529
          %2607 = vmatprep.subr.mxu0 %v2532
          %2608 = vmatpush1.msra.mxu0 %v2531
          %2609 = vmatprep.subr.mxu0 %v2534
          %2610 = vmatpush1.msra.mxu0 %v2533
          %2611 = vmatprep.subr.mxu0 %v2536
          %2612 = vmatpush1.msra.mxu0 %v2535
          %2613 = vmatprep.subr.mxu0 %v2538
          %2614 = vmatpush1.msra.mxu0 %v2537
          %2615 = vmatprep.subr.mxu0 %v2540
          %2616 = vmatpush1.msra.mxu0 %v2539
          %2617 = vmatprep.subr.mxu0 %v2542
          %2618 = vmatpush1.msra.mxu0 %v2541
          %2619 = vmatprep.subr.mxu0 %v2544
          %2620 = vmatpush1.msra.mxu0 %v2543
          %2621 = vmatprep.subr.mxu0 %v2546
          %2622 = vmatpush1.msra.mxu0 %v2545
          %2623 = vmatprep.subr.mxu0 %v2548
          %2624 = vmatpush1.msra.mxu0 %v2547
          %2625 = vmatprep.subr.mxu0 %v2550
          %2626 = vmatpush1.msra.mxu0 %v2549
          %2627 = vmatprep.subr.mxu0 %v2552
          %2628 = vmatpush1.msra.mxu0 %v2551
          %2629 = vmatprep.subr.mxu0 %v2554
          %2630 = vmatpush1.msra.mxu0 %v2553
          %2631 = vmatprep.subr.mxu0 %v2556
          %2632 = vmatpush1.msra.mxu0 %v2555
          %2633 = vmatprep.subr.mxu0 %v2558
          %2634 = vmatpush1.msra.mxu0 %v2557
          %2635 = vmatprep.subr.mxu0 %v2560
          %2636 = vmatpush1.msra.mxu0 %v2559
          %2637 = vmatprep.subr.mxu0 %v2562
          %2638 = vmatpush1.msra.mxu0 %v2561
          %2639 = vmatprep.subr.mxu0 %v2564
          %2640 = vmatpush1.msra.mxu0 %v2563
          %2641 = vmatprep.subr.mxu0 %v2566
          %2642 = vmatpush1.msra.mxu0 %v2565
          %2643 = vmatprep.subr.mxu0 %v2568
          %2644 = vmatpush1.msra.mxu0 %v2567
          %2645 = vmatprep.subr.mxu0 %v2570
          %2646 = vmatpush1.msra.mxu0 %v2569
          %2647 = vmatprep.subr.mxu0 %v2572
          %2648 = vmatpush1.msra.mxu0 %v2571
          %2649 = vmatprep.subr.mxu0 %v2574
          %2650 = vmatpush1.msra.mxu0 %v2573
          %2651 = vmatprep.subr.mxu0 %v2576
          %2652 = vmatpush1.msra.mxu0 %v2575
          %2653 = vmatprep.mubr.f32.mxu0 %v2512
          %2654 = vmatmul.mubr.f32.gmra.mrb[0].mxu0 %v2511
          %v2655 = vpop.f32.mrb[0].mxu0
          %v2656 = vadd.f32 %v2582, %v2655
          %v2657 = vpop.f32.mrb[0].mxu0
          %v2658 = vadd.f32 %v2586, %v2657
          %2659 = vdwg.mxu0
          %v2660 = vrot.slane %v2656, 4
          %v2661 = vadd.f32 %v2656, %v2660
          %v2662 = vrot.slane %v2661, 2
          %v2663 = vadd.f32 %v2661, %v2662
          %v2664 = vrot.slane %v2663, 1
          %v2665 = vadd.f32 %v2663, %v2664
          %v2666 = vrot.slane %v2658, 4
          %v2667 = vadd.f32 %v2658, %v2666
          %v2668 = vrot.slane %v2667, 2
          %v2669 = vadd.f32 %v2667, %v2668
          %v2670 = vrot.slane %v2669, 1
          %v2671 = vadd.f32 %v2669, %v2670
          %v2672 = vrcp.pop 8.0
          %v2673 = vmul.f32 %v2665, %v2672
          %v2674 = vmul.f32 %v2671, %v2672
          %v2675 = vsub.f32 %v2656, %v2673
          %v2676 = vsub.f32 %v2658, %v2674
          %v2677 = vmul.f32 %v2675, %v2675
          %v2678 = vmul.f32 %v2676, %v2676
          %v2679 = vrot.slane %v2677, 4
          %v2680 = vadd.f32 %v2677, %v2679
          %v2681 = vrot.slane %v2680, 2
          %v2682 = vadd.f32 %v2680, %v2681
          %v2683 = vrot.slane %v2682, 1
          %v2684 = vadd.f32 %v2682, %v2683
          %v2685 = vrot.slane %v2678, 4
          %v2686 = vadd.f32 %v2678, %v2685
          %v2687 = vrot.slane %v2686, 2
          %v2688 = vadd.f32 %v2686, %v2687
          %v2689 = vrot.slane %v2688, 1
          %v2690 = vadd.f32 %v2688, %v2689
          %v2691 = vmul.f32 %v2684, %v2672
          %v2692 = vmul.f32 %v2690, %v2672
          %v2693 = vadd.f32 %v2691, 1e-05
          %v2694 = vadd.f32 %v2692, 1e-05
          %v2695 = vrsqrt.pop %v2693
          %v2696 = vrsqrt.pop %v2694
          %v2697 = vld [vmem:[#allocation12] sm:$0x3]
          %v2699 = vlaneseq
          %v2700 = vshrl.u32 %v2699, 7
          %v2701 = vsub.s32 0, %v2700
          %v2702 = vrot.slane %v2697, %v2701
          %v2703 = vlaneseq
          %v2704 = vshrl.u32 %v2703, 7
          %v2705 = vsub.s32 1, %v2704
          %v2706 = vrot.slane %v2697, %v2705
          %v2709 = vmul.f32 %v2695, %v2702
          %v2710 = vmul.f32 %v2696, %v2706
          %v2711 = vlaneseq
          %v2712 = vshrl.u32 %v2711, 7
          %v2713 = vsub.s32 0, %v2712
          %v2714 = vrot.slane %v2709, %v2713
          %v2715 = vlaneseq
          %v2716 = vshrl.u32 %v2715, 7
          %v2717 = vsub.s32 0, %v2716
          %v2718 = vrot.slane %v2710, %v2717
          %v2719 = vmul.f32 %v2675, %v2714
          %v2720 = vmul.f32 %v2676, %v2718
          %v2721 = vld [vmem:[#allocation14] sm:$0x3]
          %v2723 = vlaneseq
          %v2724 = vshrl.u32 %v2723, 7
          %v2725 = vsub.s32 0, %v2724
          %v2726 = vrot.slane %v2721, %v2725
          %v2727 = vlaneseq
          %v2728 = vshrl.u32 %v2727, 7
          %v2729 = vsub.s32 1, %v2728
          %v2730 = vrot.slane %v2721, %v2729
          %v2733 = vadd.f32 %v2719, %v2726
          %v2734 = vadd.f32 %v2720, %v2730
          %v2735 = vmax.f32 %v2733, 0.0
          %v2736 = vmax.f32 %v2734, 0.0
          %v2737 = vld [vmem:[#allocation15] sm:$0xff]
          %v2738 = vld [vmem:[#allocation15 + $0x8] sm:$0xff]
          %v2739 = vld [vmem:[#allocation15 + $0x10] sm:$0xff]
          %v2740 = vld [vmem:[#allocation15 + $0x18] sm:$0xff]
          %v2741 = vld [vmem:[#allocation15 + $0x20] sm:$0xff]
          %v2742 = vld [vmem:[#allocation15 + $0x28] sm:$0xff]
          %v2743 = vld [vmem:[#allocation15 + $0x30] sm:$0xff]
          %v2744 = vld [vmem:[#allocation15 + $0x38] sm:$0xff]
          %v2745 = vld [vmem:[#allocation15 + $0x40] sm:$0xff]
          %v2746 = vld [vmem:[#allocation15 + $0x48] sm:$0xff]
          %v2747 = vld [vmem:[#allocation15 + $0x50] sm:$0xff]
          %v2748 = vld [vmem:[#allocation15 + $0x58] sm:$0xff]
          %v2749 = vld [vmem:[#allocation15 + $0x60] sm:$0xff]
          %v2750 = vld [vmem:[#allocation15 + $0x68] sm:$0xff]
          %v2751 = vld [vmem:[#allocation15 + $0x70] sm:$0xff]
          %v2752 = vld [vmem:[#allocation15 + $0x78] sm:$0xff]
          %v2753 = vld [vmem:[#allocation15 + $0x80] sm:$0xff]
          %v2754 = vld [vmem:[#allocation15 + $0x88] sm:$0xff]
          %v2755 = vld [vmem:[#allocation15 + $0x90] sm:$0xff]
          %v2756 = vld [vmem:[#allocation15 + $0x98] sm:$0xff]
          %v2757 = vld [vmem:[#allocation15 + $0xa0] sm:$0xff]
          %v2758 = vld [vmem:[#allocation15 + $0xa8] sm:$0xff]
          %v2759 = vld [vmem:[#allocation15 + $0xb0] sm:$0xff]
          %v2760 = vld [vmem:[#allocation15 + $0xb8] sm:$0xff]
          %v2761 = vld [vmem:[#allocation15 + $0xc0] sm:$0xff]
          %v2762 = vld [vmem:[#allocation15 + $0xc8] sm:$0xff]
          %v2763 = vld [vmem:[#allocation15 + $0xd0] sm:$0xff]
          %v2764 = vld [vmem:[#allocation15 + $0xd8] sm:$0xff]
          %v2765 = vld [vmem:[#allocation15 + $0xe0] sm:$0xff]
          %v2766 = vld [vmem:[#allocation15 + $0xe8] sm:$0xff]
          %v2767 = vld [vmem:[#allocation15 + $0xf0] sm:$0xff]
          %v2768 = vld [vmem:[#allocation15 + $0xf8] sm:$0xff]
          %v2769 = vld [vmem:[#allocation17] sm:$0x1]
          %v2771 = vlaneseq
          %v2772 = vshrl.u32 %v2771, 7
          %v2773 = vsub.s32 0, %v2772
          %v2774 = vrot.slane %v2769, %v2773
          %2776 = vmatprep.subr.mxu0 0.0
          %2777 = vmatpush1.msra.mxu0 %v2737
          %2778 = vmatprep.subr.mxu0 0.0
          %2779 = vmatpush1.msra.mxu0 %v2738
          %2780 = vmatprep.subr.mxu0 0.0
          %2781 = vmatpush1.msra.mxu0 %v2739
          %2782 = vmatprep.subr.mxu0 0.0
          %2783 = vmatpush1.msra.mxu0 %v2740
          %2784 = vmatprep.subr.mxu0 0.0
          %2785 = vmatpush1.msra.mxu0 %v2741
          %2786 = vmatprep.subr.mxu0 0.0
          %2787 = vmatpush1.msra.mxu0 %v2742
          %2788 = vmatprep.subr.mxu0 0.0
          %2789 = vmatpush1.msra.mxu0 %v2743
          %2790 = vmatprep.subr.mxu0 0.0
          %2791 = vmatpush1.msra.mxu0 %v2744
          %2792 = vmatprep.subr.mxu0 0.0
          %2793 = vmatpush1.msra.mxu0 %v2745
          %2794 = vmatprep.subr.mxu0 0.0
          %2795 = vmatpush1.msra.mxu0 %v2746
          %2796 = vmatprep.subr.mxu0 0.0
          %2797 = vmatpush1.msra.mxu0 %v2747
          %2798 = vmatprep.subr.mxu0 0.0
          %2799 = vmatpush1.msra.mxu0 %v2748
          %2800 = vmatprep.subr.mxu0 0.0
          %2801 = vmatpush1.msra.mxu0 %v2749
          %2802 = vmatprep.subr.mxu0 0.0
          %2803 = vmatpush1.msra.mxu0 %v2750
          %2804 = vmatprep.subr.mxu0 0.0
          %2805 = vmatpush1.msra.mxu0 %v2751
          %2806 = vmatprep.subr.mxu0 0.0
          %2807 = vmatpush1.msra.mxu0 %v2752
          %2808 = vmatprep.subr.mxu0 0.0
          %2809 = vmatpush1.msra.mxu0 %v2753
          %2810 = vmatprep.subr.mxu0 0.0
          %2811 = vmatpush1.msra.mxu0 %v2754
          %2812 = vmatprep.subr.mxu0 0.0
          %2813 = vmatpush1.msra.mxu0 %v2755
          %2814 = vmatprep.subr.mxu0 0.0
          %2815 = vmatpush1.msra.mxu0 %v2756
          %2816 = vmatprep.subr.mxu0 0.0
          %2817 = vmatpush1.msra.mxu0 %v2757
          %2818 = vmatprep.subr.mxu0 0.0
          %2819 = vmatpush1.msra.mxu0 %v2758
          %2820 = vmatprep.subr.mxu0 0.0
          %2821 = vmatpush1.msra.mxu0 %v2759
          %2822 = vmatprep.subr.mxu0 0.0
          %2823 = vmatpush1.msra.mxu0 %v2760
          %2824 = vmatprep.subr.mxu0 0.0
          %2825 = vmatpush1.msra.mxu0 %v2761
          %2826 = vmatprep.subr.mxu0 0.0
          %2827 = vmatpush1.msra.mxu0 %v2762
          %2828 = vmatprep.subr.mxu0 0.0
          %2829 = vmatpush1.msra.mxu0 %v2763
          %2830 = vmatprep.subr.mxu0 0.0
          %2831 = vmatpush1.msra.mxu0 %v2764
          %2832 = vmatprep.subr.mxu0 0.0
          %2833 = vmatpush1.msra.mxu0 %v2765
          %2834 = vmatprep.subr.mxu0 0.0
          %2835 = vmatpush1.msra.mxu0 %v2766
          %2836 = vmatprep.subr.mxu0 0.0
          %2837 = vmatpush1.msra.mxu0 %v2767
          %2838 = vmatprep.subr.mxu0 0.0
          %2839 = vmatpush1.msra.mxu0 %v2768
          %2840 = vmatprep.mubr.f32.mxu0 %v2736
          %2841 = vmatmul.mubr.f32.gmra.mrb[0].mxu0 %v2735
          %v2842 = vpop.f32.mrb[0].mxu0
          %v2843 = vadd.f32 %v2774, %v2842
          %v2844 = vpop.f32.mrb[0].mxu0
          %2845 = vdwg.mxu0
          %v2846 = vrot.slane %v2843, 4
          %v2847 = vadd.f32 %v2843, %v2846
          %v2848 = vrot.slane %v2847, 2
          %v2849 = vadd.f32 %v2847, %v2848
          %v2850 = vrot.slane %v2849, 1
          %v2851 = vadd.f32 %v2849, %v2850
          %v2852 = vmul.f32 %v2851, %v2672
          %v2853 = vsub.f32 %v2843, %v2852
          %v2854 = vmul.f32 %v2853, %v2853
          %v2855 = vrot.slane %v2854, 4
          %v2856 = vadd.f32 %v2854, %v2855
          %v2857 = vrot.slane %v2856, 2
          %v2858 = vadd.f32 %v2856, %v2857
          %v2859 = vrot.slane %v2858, 1
          %v2860 = vadd.f32 %v2858, %v2859
          %v2861 = vmul.f32 %v2860, %v2672
          %v2862 = vadd.f32 %v2861, 1e-05
          %v2863 = vrsqrt.pop %v2862
          %v2864 = vld [vmem:[#allocation18] sm:$0x1]
          %v2865 = vmul.f32 %v2863, %v2864
          %v2866 = vlaneseq
          %v2867 = vshrl.u32 %v2866, 7
          %v2868 = vsub.s32 0, %v2867
          %v2869 = vrot.slane %v2865, %v2868
          %v2870 = vmul.f32 %v2853, %v2869
          %v2871 = vld [vmem:[#allocation20] sm:$0x1]
          %v2873 = vlaneseq
          %v2874 = vshrl.u32 %v2873, 7
          %v2875 = vsub.s32 0, %v2874
          %v2876 = vrot.slane %v2871, %v2875
          %v2878 = vadd.f32 %v2870, %v2876
          %v2879 = vlaneseq
          %v2880 = vand.u32 %v2879, 127
          %vm2881 = vcmp.lt.s32.totalorder %v2880, 16
          %v2882 = vsel %vm2881, %v2878, -1e+30
          %2883 = vmax.xlane.f32.xlu0 %v2882
          %v2884 = vpop.xlane.xlu0 %2883
          %v2885 = vsub.f32 %v2882, %v2884
          %v2886 = vmul.f32 %v2885, 1.442695
          %v2887 = vpow.pop %v2886
          %2888 = vadd.xlane.f32.xlu0 %v2887
          %v2889 = vpop.xlane.xlu0 %2888
          %v2890 = vlog2.pop %v2889
          %v2891 = vmul.f32 %v2890, 0.6931472
          %v2892 = vadd.f32 %v2884, %v2891
          %v2893 = vsub.f32 %v2882, %v2892
          %2894 = vst [vmem:[#allocation21] sm:$0xff] %v2893
          %v2895 = vrcp.pop %v2889
          %v2896 = vmul.f32 %v2887, %v2895
          %2897 = vst [vmem:[#allocation22] sm:$0xff] %v2896
        $region116: #{tpu_custom_call.1} parent=63 // pred_fallthru
          _
        // Predicated region
        $region117: #{tpu_custom_call.1} parent=63 // pred_check
          %p2898 = pneg %p283
        $region118: #{tpu_custom_call.1} parent=63 // pred_check_branch
          %2900 = sbr.rel (%p2898) target = $region120
        $region119: #{tpu_custom_call.1} parent=63 // pred_region
          %s2902 = ssub.s32 128, 128
          %2903 = vsyncadd [#allocation5], %s2902
          %s2905 = sshll.u32 [#allocation21], 4
          %s2906 = int_to_ptr.vmem [resolvable:$true] %s2905
          %2908 = dma.vmem_to_hbm [thread:$0]  %s2906, 128, %s11, [#allocation5]
        $region120: #{tpu_custom_call.1} parent=63 // pred_fallthru
          _
        // Predicated region
        $region121: #{tpu_custom_call.1} parent=63 // pred_check
          %p2909 = pneg %p304
        $region122: #{tpu_custom_call.1} parent=63 // pred_check_branch
          %2911 = sbr.rel (%p2909) target = $region124
        $region123: #{tpu_custom_call.1} parent=63 // pred_region
          %s2913 = ssub.s32 128, 128
          %2914 = vsyncadd [#allocation23], %s2913
          %s2916 = sshll.u32 [#allocation22], 4
          %s2917 = int_to_ptr.vmem [resolvable:$true] %s2916
          %2919 = dma.vmem_to_hbm [thread:$0]  %s2917, 128, %s12, [#allocation23]
        $region124: #{tpu_custom_call.1} parent=63 // pred_fallthru
          _
        // Predicated region
        $region125: #{tpu_custom_call.1} parent=63 // pred_check
          %p2920 = pneg %p283
        $region126: #{tpu_custom_call.1} parent=63 // pred_check_branch
          %2922 = sbr.rel (%p2920) target = $region128
        $region127: #{tpu_custom_call.1} parent=63 // pred_region
          %2923 = dma.done [#allocation5], 128
        $region128: #{tpu_custom_call.1} parent=63 // pred_fallthru
          _
        // Predicated region
        $region129: #{tpu_custom_call.1} parent=63 // pred_check
          %p2924 = pneg %p304
        $region130: #{tpu_custom_call.1} parent=63 // pred_check_branch
          %2926 = sbr.rel (%p2924) target = $region132
        $region131: #{tpu_custom_call.1} parent=63 // pred_region
          %2927 = dma.done [#allocation23], 128
        $region132: #{tpu_custom_call.1} parent=63 // pred_fallthru
          _
      $region64: #{tpu_custom_call.1} parent=5 // pred_fallthru
        _
      %p2928 = scmp.le.s32.totalorder 2, %s29
      // Predicated region
      $region133: #{tpu_custom_call.1} parent=5 // pred_check
        %p2929 = pneg %p2928
      $region134: #{tpu_custom_call.1} parent=5 // pred_check_branch
        %2931 = sbr.rel (%p2929) target = $region136
      $region135: #{tpu_custom_call.1} parent=5 // pred_region
        %s2932 = ssub.s32 %s29, 2
      $region136: #{tpu_custom_call.1} parent=5 // pred_fallthru
        _
    $region6: #{tpu_custom_call.1} parent=1 // loop_footer
      %s33 = sadd.s32 1, %s29
    $region7: #{tpu_custom_call.1} parent=1 // loop_footer_branch
      %28 = sbr.rel target = $region3
    $region8: #{tpu_custom_call.1} parent=1 // loop_exit
      _
    %2933 = vsyncpa [#allocation4], 1
    %s2934 = scalar_lea.sflag [#allocation4], 1
    %2935 = vsyncpa %s2934, 1
    %2936 = vsyncpa [#allocation7], 1
    %s2937 = scalar_lea.sflag [#allocation7], 1
    %2938 = vsyncpa %s2937, 1
    %2939 = vsyncpa [#allocation10], 1
    %2940 = vsyncpa [#allocation13], 1
    %2941 = vsyncpa [#allocation16], 1
    %2942 = vsyncpa [#allocation19], 1
    %2943 = vsyncpa [#allocation5], 1
    %s2944 = scalar_lea.sflag [#allocation5], 1
    %2945 = vsyncpa %s2944, 1
    %2946 = vsyncpa [#allocation23], 1

</llo_original>
